<compile_context>
chip_gen: v7x
topology: tpu7x:2x2x1
jax: 0.10.0
libtpu: 0.0.40
codegen_flags: <defaults>
</compile_context>

<pallas_src>
import math

import jax
import jax.numpy as jnp
from jax import lax
from jax.experimental import pallas as pl
from jax.experimental.pallas import tpu as pltpu


def _make_kernel(num_heads, head_dim, q_tile, mxu_dtype):
    inv_scale = 1.0 / math.sqrt(float(head_dim))
    heads_per_group = 2 if num_heads % 2 == 0 else 1
    num_groups = num_heads // heads_per_group
    group_width = heads_per_group * head_dim
    # bf16 exp when the MXU dtype is bf16 (EUP is the binding slot of the
    # softmax phase); keep f32 exp for the f32 path.
    exp_dtype = jnp.bfloat16 if mxu_dtype == jnp.bfloat16 else jnp.float32

    def kernel(x_ref, wq_ref, wk_ref, wv_ref, bq_ref, bk_ref, bv_ref,
               mask_ref, o_ref, k_scr, v_scr):
        # x_ref:    (1, S, H)   full batch row (compute dtype), invariant along t
        # w*_ref:   (H, H)      projection weights, native (in, out) layout, Buffered(1)
        # b*_ref:   (1, H)      projection biases (f32), Buffered(1)
        # mask_ref: (1, 1, S)   additive mask for this batch row (f32)
        # o_ref:    (1, tq, H)  output tile, already in final (B, S, H) layout
        # k_scr/v_scr: (S, H)   K/V projections for this row (compute dtype),
        #                       carried across the query-tile grid axis.
        t = pl.program_id(1)

        # ---- once per batch row: project K and V for the full sequence ----
        @pl.when(t == 0)
        def _():
            x_full = x_ref[0]                                           # (S, H)
            k = jnp.dot(x_full, wk_ref[...],
                        preferred_element_type=jnp.float32) + bk_ref[...]
            v = jnp.dot(x_full, wv_ref[...],
                        preferred_element_type=jnp.float32) + bv_ref[...]
            k_scr[...] = k.astype(mxu_dtype)
            v_scr[...] = v.astype(mxu_dtype)

        # ---- per query tile: project Q (full MXU N dim = H) ----
        q0 = pl.multiple_of(t * q_tile, q_tile)
        xq = x_ref[0, pl.ds(q0, q_tile), :]                             # (tq, H)
        q = jnp.dot(xq, wq_ref[...],
                    preferred_element_type=jnp.float32) + bq_ref[...]
        # Fold 1/sqrt(Dh) into q and into the mask row: (s + m)/c == s/c + m/c,
        # so this matches the reference's "mask added before scaling".
        # Cast once here (hoisted out of the head loop).
        q = (q * inv_scale).astype(mxu_dtype)                           # (tq, H)
        m = mask_ref[0] * inv_scale                                     # (1, S) f32

        # ---- attention, heads processed in pairs (128-wide column groups) ----
        for g in range(num_groups):
            base = g * group_width
            qs, ks, vs = [], [], []
            for i in range(heads_per_group):
                sl = slice(base + i * head_dim, base + (i + 1) * head_dim)
                qs.append(q[:, sl])                                     # (tq, Dh)
                ks.append(k_scr[:, sl])                                 # (S,  Dh)
                vs.append(v_scr[:, sl])                                 # (S,  Dh)
            qg = jnp.stack(qs, axis=0)                                  # (hpg, tq, Dh)
            kg = jnp.stack(ks, axis=0)                                  # (hpg, S,  Dh)
            vg = jnp.stack(vs, axis=0)                                  # (hpg, S,  Dh)

            # Q @ K^T for the whole head pair as one batched MXU issue
            # (contract last dims, batch over the leading head dim).
            s = lax.dot_general(qg, kg,
                                dimension_numbers=(((2,), (2,)), ((0,), (0,))),
                                preferred_element_type=jnp.float32)     # (hpg, tq, S)
            s = s + m                                                   # additive mask
            s = s - jnp.max(s, axis=-1, keepdims=True)
            p = jnp.exp(s.astype(exp_dtype))                            # (hpg, tq, S)
            # f32 row sums for the deferred softmax normalization.
            denom = jnp.sum(p.astype(jnp.float32), axis=-1, keepdims=True)

            og = lax.dot_general(p, vg,
                                 dimension_numbers=(((2,), (1,)), ((0,), (0,))),
                                 preferred_element_type=jnp.float32)    # (hpg, tq, Dh)
            # Deferred normalization: scale the (tq, Dh) output instead of the
            # (tq, S) probability matrix (S/Dh x fewer VPU multiplies).
            og = og * pl.reciprocal(denom, approx=True)

            if heads_per_group == 1:
                o_tile = og[0]
            else:
                o_tile = jnp.concatenate([og[i] for i in range(heads_per_group)],
                                         axis=-1)                       # (tq, gw)
            # Lane-dense 128-wide (at BERT shapes) store straight into the
            # output tile: bounds live ranges, no big end-of-kernel concat.
            o_ref[0, :, base:base + group_width] = o_tile.astype(o_ref.dtype)

    return kernel


def bert_self_attention(hidden_states, attention_mask, params, num_heads,
                        compute_dtype=jnp.bfloat16, out_dtype=jnp.float32,
                        q_tile=256):
    """BertSelfAttention forward (eval mode: dropout is identity).

    hidden_states:  (B, S, H) float
    attention_mask: (B, 1, 1, S) additive mask (0 for real tokens, large
                    negative for padding)
    params: wq/wk/wv of shape (H, H) in (in, out) layout, bq/bk/bv of shape (H,)

    compute_dtype: dtype fed to the MXU.  bfloat16 by default on every chip
      (v5e's MXU is bf16-native too); accumulation is always float32.
      Pass jnp.float32 for a bit-tighter numerics.
    out_dtype: output dtype; pass jnp.bfloat16 if the next layer accepts it
      to halve output HBM writeback and the output double buffer.
    q_tile: query-tile length; bounds the (tq, S) score tensor in VMEM.
    """
    B, S, H = hidden_states.shape
    assert H % num_heads == 0
    Dh = H // num_heads

    # Query tile: use q_tile if it evenly divides S, otherwise the whole row.
    tq = q_tile if (S > q_tile and S % q_tile == 0) else S
    n_q_tiles = S // tq

    x = hidden_states.astype(compute_dtype)
    wq = params["wq"].astype(compute_dtype)
    wk = params["wk"].astype(compute_dtype)
    wv = params["wv"].astype(compute_dtype)
    bq = params["bq"].reshape(1, H).astype(jnp.float32)
    bk = params["bk"].reshape(1, H).astype(jnp.float32)
    bv = params["bv"].reshape(1, H).astype(jnp.float32)
    mask = attention_mask.reshape(B, 1, S).astype(jnp.float32)

    kernel = _make_kernel(num_heads, Dh, tq, compute_dtype)

    in_bytes = jnp.dtype(compute_dtype).itemsize
    out_bytes = jnp.dtype(out_dtype).itemsize
    flops = B * (3 * 2 * S * H * H) + B * num_heads * (2 * (2 * S * S * Dh))
    transcendentals = B * num_heads * S * S
    bytes_accessed = ((B * S * H + 3 * H * H) * in_bytes
                      + (3 * H + B * S) * 4          # biases + mask (f32)
                      + B * S * H * out_bytes)       # output

    def weight_spec():
        # Grid-invariant -> fetched once; single-buffer to avoid a dead copy.
        return pl.BlockSpec((H, H), lambda b, t: (0, 0),
                            pipeline_mode=pl.Buffered(1))

    def bias_spec():
        return pl.BlockSpec((1, H), lambda b, t: (0, 0),
                            pipeline_mode=pl.Buffered(1))

    out = pl.pallas_call(
        kernel,
        out_shape=jax.ShapeDtypeStruct((B, S, H), out_dtype),
        grid_spec=pltpu.PrefetchScalarGridSpec(
            num_scalar_prefetch=0,
            grid=(B, n_q_tiles),
            in_specs=[
                pl.BlockSpec((1, S, H), lambda b, t: (b, 0, 0)),   # x (re-DMA per b only)
                weight_spec(),                                     # Wq
                weight_spec(),                                     # Wk
                weight_spec(),                                     # Wv
                bias_spec(),                                       # bq
                bias_spec(),                                       # bk
                bias_spec(),                                       # bv
                pl.BlockSpec((1, 1, S), lambda b, t: (b, 0, 0)),   # mask
            ],
            out_specs=pl.BlockSpec((1, tq, H), lambda b, t: (b, t, 0)),
            scratch_shapes=[pltpu.VMEM((S, H), compute_dtype),     # K scratch
                            pltpu.VMEM((S, H), compute_dtype)],    # V scratch
        ),
        compiler_params=pltpu.CompilerParams(
            # Batch axis is embarrassingly parallel (megacore / v7x 2 TCs).
            # The query-tile axis carries the K/V scratch written at t == 0,
            # so it must stay sequential ("arbitrary").
            dimension_semantics=("parallel", "arbitrary"),
            # ~48 MiB: fits BERT-base/large at S=512 (bf16 + Buffered(1)
            # weights) and leaves headroom inside v7x's 64 MiB/TC physical
            # VMEM (v5e/v6e have 128 MiB).
            vmem_limit_bytes=48 * 1024 * 1024,
        ),
        cost_estimate=pl.CostEstimate(
            flops=flops,
            transcendentals=transcendentals,
            bytes_accessed=bytes_accessed,
        ),
    )(x, wq, wk, wv, bq, bk, bv, mask)

    return out


def _reference(hidden_states, attention_mask, params, num_heads):
    """Pure-JAX reference mirroring the PyTorch module (eval mode)."""
    B, S, H = hidden_states.shape
    Dh = H // num_heads

    def proj(w, b):
        p = hidden_states @ w + b                                   # (B, S, H)
        return jnp.transpose(p.reshape(B, S, num_heads, Dh), (0, 2, 1, 3))

    q = proj(params["wq"], params["bq"])
    k = proj(params["wk"], params["bk"])
    v = proj(params["wv"], params["bv"])
    att = jnp.einsum("bhqd,bhkd->bhqk", q, k)
    att = att + attention_mask                                      # broadcast (B,1,1,S)
    att = att / (Dh ** 0.5)
    att = jax.nn.softmax(att, axis=-1)
    res = jnp.einsum("bhqk,bhkd->bhqd", att, v)
    return jnp.transpose(res, (0, 2, 1, 3)).reshape(B, S, H)


if __name__ == "__main__":
    B, S, H, NH = 2, 8, 32, 4

    key = jax.random.PRNGKey(0)
    k_x, k_m, k_wq, k_wk, k_wv, k_bq, k_bk, k_bv = jax.random.split(key, 8)

    hidden_states = jax.random.normal(k_x, (B, S, H), dtype=jnp.float32)
    # additive mask: 0 for real tokens, -10000 for padded tail (last 2 tokens of batch 1)
    pad = jnp.zeros((B, S), dtype=jnp.float32).at[1, -2:].set(-10000.0)
    attention_mask = pad.reshape(B, 1, 1, S)

    scale = 0.02
    params = {
        "wq": scale * jax.random.normal(k_wq, (H, H), dtype=jnp.float32),
        "wk": scale * jax.random.normal(k_wk, (H, H), dtype=jnp.float32),
        "wv": scale * jax.random.normal(k_wv, (H, H), dtype=jnp.float32),
        "bq": scale * jax.random.normal(k_bq, (H,), dtype=jnp.float32),
        "bk": scale * jax.random.normal(k_bk, (H,), dtype=jnp.float32),
        "bv": scale * jax.random.normal(k_bv, (H,), dtype=jnp.float32),
    }

    ref = _reference(hidden_states, attention_mask, params, NH)

    # f32 MXU path: tight check against the reference.
    out_f32 = bert_self_attention(hidden_states, attention_mask, params, NH,
                                  compute_dtype=jnp.float32)
    out_f32 = jax.block_until_ready(out_f32)
    assert out_f32.shape == (B, S, H)
    assert jnp.allclose(out_f32, ref, atol=1e-3, rtol=1e-3), "f32 mismatch vs reference"

    # Default path: bf16 MXU inputs + bf16 exp, f32 accumulate: looser tolerance.
    out_bf16 = bert_self_attention(hidden_states, attention_mask, params, NH)
    out_bf16 = jax.block_until_ready(out_bf16)
    assert out_bf16.shape == (B, S, H)
    assert jnp.allclose(out_bf16, ref, atol=3e-2, rtol=3e-2), "bf16 mismatch vs reference"

    print("KERNEL_OK")
</pallas_src>

<mosaic_0001>
module attributes {stable_mosaic.version = 11 : i64} {
  func.func @kernel(%arg0: i32, %arg1: i32, %arg2: memref<1x8x32xf32, #tpu.memory_space<vmem>>, %arg3: memref<32x32xf32, #tpu.memory_space<vmem>>, %arg4: memref<32x32xf32, #tpu.memory_space<vmem>>, %arg5: memref<32x32xf32, #tpu.memory_space<vmem>>, %arg6: memref<1x32xf32, #tpu.memory_space<vmem>>, %arg7: memref<1x32xf32, #tpu.memory_space<vmem>>, %arg8: memref<1x32xf32, #tpu.memory_space<vmem>>, %arg9: memref<1x1x8xf32, #tpu.memory_space<vmem>>, %arg10: memref<1x8x32xf32, #tpu.memory_space<vmem>>, %arg11: memref<8x32xf32, #tpu.memory_space<vmem>>, %arg12: memref<8x32xf32, #tpu.memory_space<vmem>>) attributes {dimension_semantics = [#tpu.dimension_semantics<parallel>, #tpu.dimension_semantics<arbitrary>], iteration_bounds = array<i64: 2, 1>, scalar_prefetch = 0 : i64, scratch_operands = 2 : i64, tpu.core_type = #tpu.core_type<tc>, window_params = [{transform_indices = @transform_0, window_bounds = array<i64: 1, 8, 32>}, {pipeline_mode = #tpu.pipeline_mode<synchronous>, transform_indices = @transform_1, window_bounds = array<i64: 32, 32>}, {pipeline_mode = #tpu.pipeline_mode<synchronous>, transform_indices = @transform_2, window_bounds = array<i64: 32, 32>}, {pipeline_mode = #tpu.pipeline_mode<synchronous>, transform_indices = @transform_3, window_bounds = array<i64: 32, 32>}, {pipeline_mode = #tpu.pipeline_mode<synchronous>, transform_indices = @transform_4, window_bounds = array<i64: 1, 32>}, {pipeline_mode = #tpu.pipeline_mode<synchronous>, transform_indices = @transform_5, window_bounds = array<i64: 1, 32>}, {pipeline_mode = #tpu.pipeline_mode<synchronous>, transform_indices = @transform_6, window_bounds = array<i64: 1, 32>}, {transform_indices = @transform_7, window_bounds = array<i64: 1, 1, 8>}, {transform_indices = @transform_8, window_bounds = array<i64: 1, 8, 32>}]} {
    %c0_i32 = arith.constant 0 : i32
    %0 = arith.cmpi eq, %arg1, %c0_i32 : i32
    %1 = arith.extui %0 : i1 to i32
    %c0_i32_0 = arith.constant 0 : i32
    %2 = arith.cmpi ne, %1, %c0_i32_0 : i32
    scf.if %2 {
      %c0_38 = arith.constant 0 : index
      %c0_39 = arith.constant 0 : index
      %c0_40 = arith.constant 0 : index
      %95 = vector.load %arg2[%c0_38, %c0_39, %c0_40] : memref<1x8x32xf32, #tpu.memory_space<vmem>>, vector<1x8x32xf32>
      %96 = vector.shape_cast %95 : vector<1x8x32xf32> to vector<8x32xf32>
      %c0_41 = arith.constant 0 : index
      %c0_42 = arith.constant 0 : index
      %97 = vector.load %arg4[%c0_41, %c0_42] : memref<32x32xf32, #tpu.memory_space<vmem>>, vector<32x32xf32>
      %cst_43 = arith.constant dense<0.000000e+00> : vector<8x32xf32>
      %98 = tpu.matmul %96, %97, %cst_43 {dimension_numbers = #tpu.dot_dimension_numbers<[1], [0], [0], [1], [0, 0, 1, 1], [], []>} : vector<8x32xf32>, vector<32x32xf32>, vector<8x32xf32> -> vector<8x32xf32>
      %c0_44 = arith.constant 0 : index
      %c0_45 = arith.constant 0 : index
      %99 = vector.load %arg7[%c0_44, %c0_45] : memref<1x32xf32, #tpu.memory_space<vmem>>, vector<1x32xf32>
      %100 = vector.broadcast %99 : vector<1x32xf32> to vector<8x32xf32>
      %101 = arith.addf %98, %100 : vector<8x32xf32>
      %c0_46 = arith.constant 0 : index
      %c0_47 = arith.constant 0 : index
      %102 = vector.load %arg5[%c0_46, %c0_47] : memref<32x32xf32, #tpu.memory_space<vmem>>, vector<32x32xf32>
      %cst_48 = arith.constant dense<0.000000e+00> : vector<8x32xf32>
      %103 = tpu.matmul %96, %102, %cst_48 {dimension_numbers = #tpu.dot_dimension_numbers<[1], [0], [0], [1], [0, 0, 1, 1], [], []>} : vector<8x32xf32>, vector<32x32xf32>, vector<8x32xf32> -> vector<8x32xf32>
      %c0_49 = arith.constant 0 : index
      %c0_50 = arith.constant 0 : index
      %104 = vector.load %arg8[%c0_49, %c0_50] : memref<1x32xf32, #tpu.memory_space<vmem>>, vector<1x32xf32>
      %105 = vector.broadcast %104 : vector<1x32xf32> to vector<8x32xf32>
      %106 = arith.addf %103, %105 : vector<8x32xf32>
      %c0_51 = arith.constant 0 : index
      %c0_52 = arith.constant 0 : index
      %107 = vector.load %arg11[%c0_51, %c0_52] : memref<8x32xf32, #tpu.memory_space<vmem>>, vector<8x32xf32>
      tpu.vector_store %arg11[%c0_51, %c0_52], %101 {strides = array<i32>} : memref<8x32xf32, #tpu.memory_space<vmem>>, vector<8x32xf32>,
      %c0_53 = arith.constant 0 : index
      %c0_54 = arith.constant 0 : index
      %108 = vector.load %arg12[%c0_53, %c0_54] : memref<8x32xf32, #tpu.memory_space<vmem>>, vector<8x32xf32>
      tpu.vector_store %arg12[%c0_53, %c0_54], %106 {strides = array<i32>} : memref<8x32xf32, #tpu.memory_space<vmem>>, vector<8x32xf32>,
    } else {
    }
    %c8_i32 = arith.constant 8 : i32
    %3 = arith.muli %arg1, %c8_i32 : i32
    %4 = tpu.assume_multiple %3, 8 : i32
    %c0 = arith.constant 0 : index
    %5 = arith.index_cast %4 : i32 to index
    %c0_1 = arith.constant 0 : index
    %6 = vector.load %arg2[%c0, %5, %c0_1] : memref<1x8x32xf32, #tpu.memory_space<vmem>>, vector<1x8x32xf32>
    %7 = vector.shape_cast %6 : vector<1x8x32xf32> to vector<8x32xf32>
    %c0_2 = arith.constant 0 : index
    %c0_3 = arith.constant 0 : index
    %8 = vector.load %arg3[%c0_2, %c0_3] : memref<32x32xf32, #tpu.memory_space<vmem>>, vector<32x32xf32>
    %cst = arith.constant dense<0.000000e+00> : vector<8x32xf32>
    %9 = tpu.matmul %7, %8, %cst {dimension_numbers = #tpu.dot_dimension_numbers<[1], [0], [0], [1], [0, 0, 1, 1], [], []>} : vector<8x32xf32>, vector<32x32xf32>, vector<8x32xf32> -> vector<8x32xf32>
    %c0_4 = arith.constant 0 : index
    %c0_5 = arith.constant 0 : index
    %10 = vector.load %arg6[%c0_4, %c0_5] : memref<1x32xf32, #tpu.memory_space<vmem>>, vector<1x32xf32>
    %11 = vector.broadcast %10 : vector<1x32xf32> to vector<8x32xf32>
    %12 = arith.addf %9, %11 : vector<8x32xf32>
    %cst_6 = arith.constant 0.353553385 : f32
    %13 = vector.broadcast %cst_6 : f32 to vector<8x32xf32>
    %14 = arith.mulf %12, %13 : vector<8x32xf32>
    %c0_7 = arith.constant 0 : index
    %c0_8 = arith.constant 0 : index
    %c0_9 = arith.constant 0 : index
    %15 = vector.load %arg9[%c0_7, %c0_8, %c0_9] : memref<1x1x8xf32, #tpu.memory_space<vmem>>, vector<1x1x8xf32>
    %16 = vector.shape_cast %15 : vector<1x1x8xf32> to vector<1x8xf32>
    %cst_10 = arith.constant 0.353553385 : f32
    %17 = vector.broadcast %cst_10 : f32 to vector<1x8xf32>
    %18 = arith.mulf %16, %17 : vector<1x8xf32>
    %19 = vector.extract_strided_slice %14 {offsets = [0, 0], sizes = [8, 8], strides = [1, 1]} : vector<8x32xf32> to vector<8x8xf32>
    %c0_11 = arith.constant 0 : index
    %c0_12 = arith.constant 0 : index
    %20 = vector.load %arg11[%c0_11, %c0_12] : memref<8x32xf32, #tpu.memory_space<vmem>>, vector<8x8xf32>
    %c0_13 = arith.constant 0 : index
    %c0_14 = arith.constant 0 : index
    %21 = vector.load %arg12[%c0_13, %c0_14] : memref<8x32xf32, #tpu.memory_space<vmem>>, vector<8x8xf32>
    %22 = vector.extract_strided_slice %14 {offsets = [0, 8], sizes = [8, 8], strides = [1, 1]} : vector<8x32xf32> to vector<8x8xf32>
    %c0_15 = arith.constant 0 : index
    %c8 = arith.constant 8 : index
    %23 = vector.load %arg11[%c0_15, %c8] : memref<8x32xf32, #tpu.memory_space<vmem>>, vector<8x8xf32>
    %c0_16 = arith.constant 0 : index
    %c8_17 = arith.constant 8 : index
    %24 = vector.load %arg12[%c0_16, %c8_17] : memref<8x32xf32, #tpu.memory_space<vmem>>, vector<8x8xf32>
    %25 = vector.shape_cast %19 : vector<8x8xf32> to vector<1x8x8xf32>
    %26 = vector.shape_cast %22 : vector<8x8xf32> to vector<1x8x8xf32>
    %27 = tpu.concatenate %25, %26 in 0 : vector<1x8x8xf32>, vector<1x8x8xf32> -> vector<2x8x8xf32>
    %28 = vector.shape_cast %20 : vector<8x8xf32> to vector<1x8x8xf32>
    %29 = vector.shape_cast %23 : vector<8x8xf32> to vector<1x8x8xf32>
    %30 = tpu.concatenate %28, %29 in 0 : vector<1x8x8xf32>, vector<1x8x8xf32> -> vector<2x8x8xf32>
    %31 = vector.shape_cast %21 : vector<8x8xf32> to vector<1x8x8xf32>
    %32 = vector.shape_cast %24 : vector<8x8xf32> to vector<1x8x8xf32>
    %33 = tpu.concatenate %31, %32 in 0 : vector<1x8x8xf32>, vector<1x8x8xf32> -> vector<2x8x8xf32>
    %cst_18 = arith.constant dense<0.000000e+00> : vector<2x8x8xf32>
    %34 = tpu.matmul %27, %30, %cst_18 {dimension_numbers = #tpu.dot_dimension_numbers<[2], [2], [1], [1], [0, 0, 0, 1, 1, 1], [0], [0]>} : vector<2x8x8xf32>, vector<2x8x8xf32>, vector<2x8x8xf32> -> vector<2x8x8xf32>
    %35 = vector.shape_cast %18 : vector<1x8xf32> to vector<1x1x8xf32>
    %36 = vector.broadcast %35 : vector<1x1x8xf32> to vector<2x8x8xf32>
    %37 = arith.addf %34, %36 : vector<2x8x8xf32>
    %cst_19 = arith.constant dense<0xFF800000> : vector<2x8xf32>
    %38 = vector.multi_reduction <maximumf>, %37, %cst_19 [2] : vector<2x8x8xf32> to vector<2x8xf32>
    %39 = vector.shape_cast %38 : vector<2x8xf32> to vector<2x8x1xf32>
    %40 = vector.broadcast %39 : vector<2x8x1xf32> to vector<2x8x8xf32>
    %41 = arith.subf %37, %40 : vector<2x8x8xf32>
    %42 = math.exp %41 : vector<2x8x8xf32>
    %cst_20 = arith.constant dense<0.000000e+00> : vector<2x8xf32>
    %43 = vector.multi_reduction <add>, %42, %cst_20 [2] : vector<2x8x8xf32> to vector<2x8xf32>
    %44 = vector.shape_cast %43 : vector<2x8xf32> to vector<2x8x1xf32>
    %cst_21 = arith.constant dense<0.000000e+00> : vector<2x8x8xf32>
    %45 = tpu.matmul %42, %33, %cst_21 {dimension_numbers = #tpu.dot_dimension_numbers<[2], [1], [1], [2], [0, 0, 0, 1, 1, 2], [0], [0]>} : vector<2x8x8xf32>, vector<2x8x8xf32>, vector<2x8x8xf32> -> vector<2x8x8xf32>
    %46 = tpu.reciprocal %44 {approx = true} : vector<2x8x1xf32> -> vector<2x8x1xf32>
    %47 = vector.broadcast %46 : vector<2x8x1xf32> to vector<2x8x8xf32>
    %48 = arith.mulf %45, %47 : vector<2x8x8xf32>
    %49 = vector.extract_strided_slice %48 {offsets = [0, 0, 0], sizes = [1, 8, 8], strides = [1, 1, 1]} : vector<2x8x8xf32> to vector<1x8x8xf32>
    %50 = vector.shape_cast %49 : vector<1x8x8xf32> to vector<8x8xf32>
    %51 = vector.extract_strided_slice %48 {offsets = [1, 0, 0], sizes = [1, 8, 8], strides = [1, 1, 1]} : vector<2x8x8xf32> to vector<1x8x8xf32>
    %52 = vector.shape_cast %51 : vector<1x8x8xf32> to vector<8x8xf32>
    %53 = tpu.concatenate %50, %52 in 1 : vector<8x8xf32>, vector<8x8xf32> -> vector<8x16xf32>
    %c0_22 = arith.constant 0 : index
    %c0_23 = arith.constant 0 : index
    %c0_24 = arith.constant 0 : index
    %54 = vector.load %arg10[%c0_22, %c0_23, %c0_24] : memref<1x8x32xf32, #tpu.memory_space<vmem>>, vector<1x8x16xf32>
    %55 = vector.shape_cast %54 : vector<1x8x16xf32> to vector<8x16xf32>
    %56 = vector.shape_cast %53 : vector<8x16xf32> to vector<1x8x16xf32>
    tpu.vector_store %arg10[%c0_22, %c0_23, %c0_24], %56 {strides = array<i32>} : memref<1x8x32xf32, #tpu.memory_space<vmem>>, vector<1x8x16xf32>,
    %57 = vector.extract_strided_slice %14 {offsets = [0, 16], sizes = [8, 8], strides = [1, 1]} : vector<8x32xf32> to vector<8x8xf32>
    %c0_25 = arith.constant 0 : index
    %c16 = arith.constant 16 : index
    %58 = vector.load %arg11[%c0_25, %c16] : memref<8x32xf32, #tpu.memory_space<vmem>>, vector<8x8xf32>
    %c0_26 = arith.constant 0 : index
    %c16_27 = arith.constant 16 : index
    %59 = vector.load %arg12[%c0_26, %c16_27] : memref<8x32xf32, #tpu.memory_space<vmem>>, vector<8x8xf32>
    %60 = vector.extract_strided_slice %14 {offsets = [0, 24], sizes = [8, 8], strides = [1, 1]} : vector<8x32xf32> to vector<8x8xf32>
    %c0_28 = arith.constant 0 : index
    %c24 = arith.constant 24 : index
    %61 = vector.load %arg11[%c0_28, %c24] : memref<8x32xf32, #tpu.memory_space<vmem>>, vector<8x8xf32>
    %c0_29 = arith.constant 0 : index
    %c24_30 = arith.constant 24 : index
    %62 = vector.load %arg12[%c0_29, %c24_30] : memref<8x32xf32, #tpu.memory_space<vmem>>, vector<8x8xf32>
    %63 = vector.shape_cast %57 : vector<8x8xf32> to vector<1x8x8xf32>
    %64 = vector.shape_cast %60 : vector<8x8xf32> to vector<1x8x8xf32>
    %65 = tpu.concatenate %63, %64 in 0 : vector<1x8x8xf32>, vector<1x8x8xf32> -> vector<2x8x8xf32>
    %66 = vector.shape_cast %58 : vector<8x8xf32> to vector<1x8x8xf32>
    %67 = vector.shape_cast %61 : vector<8x8xf32> to vector<1x8x8xf32>
    %68 = tpu.concatenate %66, %67 in 0 : vector<1x8x8xf32>, vector<1x8x8xf32> -> vector<2x8x8xf32>
    %69 = vector.shape_cast %59 : vector<8x8xf32> to vector<1x8x8xf32>
    %70 = vector.shape_cast %62 : vector<8x8xf32> to vector<1x8x8xf32>
    %71 = tpu.concatenate %69, %70 in 0 : vector<1x8x8xf32>, vector<1x8x8xf32> -> vector<2x8x8xf32>
    %cst_31 = arith.constant dense<0.000000e+00> : vector<2x8x8xf32>
    %72 = tpu.matmul %65, %68, %cst_31 {dimension_numbers = #tpu.dot_dimension_numbers<[2], [2], [1], [1], [0, 0, 0, 1, 1, 1], [0], [0]>} : vector<2x8x8xf32>, vector<2x8x8xf32>, vector<2x8x8xf32> -> vector<2x8x8xf32>
    %73 = vector.shape_cast %18 : vector<1x8xf32> to vector<1x1x8xf32>
    %74 = vector.broadcast %73 : vector<1x1x8xf32> to vector<2x8x8xf32>
    %75 = arith.addf %72, %74 : vector<2x8x8xf32>
    %cst_32 = arith.constant dense<0xFF800000> : vector<2x8xf32>
    %76 = vector.multi_reduction <maximumf>, %75, %cst_32 [2] : vector<2x8x8xf32> to vector<2x8xf32>
    %77 = vector.shape_cast %76 : vector<2x8xf32> to vector<2x8x1xf32>
    %78 = vector.broadcast %77 : vector<2x8x1xf32> to vector<2x8x8xf32>
    %79 = arith.subf %75, %78 : vector<2x8x8xf32>
    %80 = math.exp %79 : vector<2x8x8xf32>
    %cst_33 = arith.constant dense<0.000000e+00> : vector<2x8xf32>
    %81 = vector.multi_reduction <add>, %80, %cst_33 [2] : vector<2x8x8xf32> to vector<2x8xf32>
    %82 = vector.shape_cast %81 : vector<2x8xf32> to vector<2x8x1xf32>
    %cst_34 = arith.constant dense<0.000000e+00> : vector<2x8x8xf32>
    %83 = tpu.matmul %80, %71, %cst_34 {dimension_numbers = #tpu.dot_dimension_numbers<[2], [1], [1], [2], [0, 0, 0, 1, 1, 2], [0], [0]>} : vector<2x8x8xf32>, vector<2x8x8xf32>, vector<2x8x8xf32> -> vector<2x8x8xf32>
    %84 = tpu.reciprocal %82 {approx = true} : vector<2x8x1xf32> -> vector<2x8x1xf32>
    %85 = vector.broadcast %84 : vector<2x8x1xf32> to vector<2x8x8xf32>
    %86 = arith.mulf %83, %85 : vector<2x8x8xf32>
    %87 = vector.extract_strided_slice %86 {offsets = [0, 0, 0], sizes = [1, 8, 8], strides = [1, 1, 1]} : vector<2x8x8xf32> to vector<1x8x8xf32>
    %88 = vector.shape_cast %87 : vector<1x8x8xf32> to vector<8x8xf32>
    %89 = vector.extract_strided_slice %86 {offsets = [1, 0, 0], sizes = [1, 8, 8], strides = [1, 1, 1]} : vector<2x8x8xf32> to vector<1x8x8xf32>
    %90 = vector.shape_cast %89 : vector<1x8x8xf32> to vector<8x8xf32>
    %91 = tpu.concatenate %88, %90 in 1 : vector<8x8xf32>, vector<8x8xf32> -> vector<8x16xf32>
    %c0_35 = arith.constant 0 : index
    %c0_36 = arith.constant 0 : index
    %c16_37 = arith.constant 16 : index
    %92 = vector.load %arg10[%c0_35, %c0_36, %c16_37] : memref<1x8x32xf32, #tpu.memory_space<vmem>>, vector<1x8x16xf32>
    %93 = vector.shape_cast %92 : vector<1x8x16xf32> to vector<8x16xf32>
    %94 = vector.shape_cast %91 : vector<8x16xf32> to vector<1x8x16xf32>
    tpu.vector_store %arg10[%c0_35, %c0_36, %c16_37], %94 {strides = array<i32>} : memref<1x8x32xf32, #tpu.memory_space<vmem>>, vector<1x8x16xf32>,
    return
  }
  func.func @transform_0(%arg0: i32, %arg1: i32) -> (i32, i32, i32) {
    %c0_i32 = arith.constant 0 : i32
    %c0_i32_0 = arith.constant 0 : i32
    %c0_i32_1 = arith.constant 0 : i32
    return %arg0, %c0_i32, %c0_i32_0 : i32, i32, i32
  }
  func.func @transform_1(%arg0: i32, %arg1: i32) -> (i32, i32) {
    %c0_i32 = arith.constant 0 : i32
    %c0_i32_0 = arith.constant 0 : i32
    %c0_i32_1 = arith.constant 0 : i32
    return %c0_i32, %c0_i32_0 : i32, i32
  }
  func.func @transform_2(%arg0: i32, %arg1: i32) -> (i32, i32) {
    %c0_i32 = arith.constant 0 : i32
    %c0_i32_0 = arith.constant 0 : i32
    %c0_i32_1 = arith.constant 0 : i32
    return %c0_i32, %c0_i32_0 : i32, i32
  }
  func.func @transform_3(%arg0: i32, %arg1: i32) -> (i32, i32) {
    %c0_i32 = arith.constant 0 : i32
    %c0_i32_0 = arith.constant 0 : i32
    %c0_i32_1 = arith.constant 0 : i32
    return %c0_i32, %c0_i32_0 : i32, i32
  }
  func.func @transform_4(%arg0: i32, %arg1: i32) -> (i32, i32) {
    %c0_i32 = arith.constant 0 : i32
    %c0_i32_0 = arith.constant 0 : i32
    %c0_i32_1 = arith.constant 0 : i32
    return %c0_i32, %c0_i32_0 : i32, i32
  }
  func.func @transform_5(%arg0: i32, %arg1: i32) -> (i32, i32) {
    %c0_i32 = arith.constant 0 : i32
    %c0_i32_0 = arith.constant 0 : i32
    %c0_i32_1 = arith.constant 0 : i32
    return %c0_i32, %c0_i32_0 : i32, i32
  }
  func.func @transform_6(%arg0: i32, %arg1: i32) -> (i32, i32) {
    %c0_i32 = arith.constant 0 : i32
    %c0_i32_0 = arith.constant 0 : i32
    %c0_i32_1 = arith.constant 0 : i32
    return %c0_i32, %c0_i32_0 : i32, i32
  }
  func.func @transform_7(%arg0: i32, %arg1: i32) -> (i32, i32, i32) {
    %c0_i32 = arith.constant 0 : i32
    %c0_i32_0 = arith.constant 0 : i32
    %c0_i32_1 = arith.constant 0 : i32
    return %arg0, %c0_i32, %c0_i32_0 : i32, i32, i32
  }
  func.func @transform_8(%arg0: i32, %arg1: i32) -> (i32, i32, i32) {
    %c0_i32 = arith.constant 0 : i32
    %c0_i32_0 = arith.constant 0 : i32
    return %arg0, %arg1, %c0_i32 : i32, i32, i32
  }
}

</mosaic_0001>

<llo_original>
// kernel: tpu_custom_call.1
$region0: #{tpu_custom_call.1}
  #allocation0 [shape = 'u32[]', space=smem, size = 0x4, offset = 0x4, fixed_abs, tag = 'smem constant byte address 0x4 - core index']
  #allocation1 [shape = 'u32[144,128]{1,0:T(1,128)}', space=vmem, size = 0x12000, scoped, tag = 'internal scratch']
  #allocation2 [shape = 'f32[8,32]{1,0:T(8,128)}', space=vmem, size = 0x1000, scoped, tag = 'scratch operand']
  #allocation3 [shape = 'f32[8,32]{1,0:T(8,128)}', space=vmem, size = 0x1000, scoped, tag = 'scratch operand']
  %s0 = inlined_call_operand.hbm [shape: f32[2,8,32], index: 0, kind: input, shape index: {}]
  %s1 = inlined_call_operand.hbm [shape: f32[32,32], index: 1, kind: input, shape index: {}]
  %s2 = inlined_call_operand.hbm [shape: f32[32,32], index: 2, kind: input, shape index: {}]
  %s3 = inlined_call_operand.hbm [shape: f32[32,32], index: 3, kind: input, shape index: {}]
  %s4 = inlined_call_operand.vmem [shape: f32[1,32], index: 4, kind: input, shape index: {}]
  %s5 = inlined_call_operand.vmem [shape: f32[1,32], index: 5, kind: input, shape index: {}]
  %s6 = inlined_call_operand.vmem [shape: f32[1,32], index: 6, kind: input, shape index: {}]
  %s7 = inlined_call_operand.vmem [shape: f32[2,1,8], index: 7, kind: input, shape index: {}]
  %s8 = inlined_call_operand.hbm [shape: f32[2,8,32], index: 8, kind: output, shape index: {}]
  %s9 = sld [smem:[#allocation0]]
  $region85: #{tpu_custom_call.1} parent=0
    _
  %s11 = ssub.s32 1, %s9
  %s12 = scalar_select 0, %s11, %s9
  $region1: #{tpu_custom_call.1} parent=0
    #allocation4 [shape = 'u8[8192]{0}', space=vmem, size = 0x2000, scoped, tag = 'input window, operand 0']
    #allocation5 [shape = 's32[2]{0}', space=sflag, size = 0x8, scoped, tag = 'scoped memory for tpu_custom_call.1']
    #allocation6 [shape = 's32[2]{0}', space=sflag, size = 0x8, scoped, tag = 'scoped memory for tpu_custom_call.1']
    #allocation7 [shape = 'u8[16384]{0}', space=vmem, size = 0x4000, scoped, tag = 'input window, operand 1, single buffered']
    #allocation8 [shape = 's32[1]{0}', space=sflag, size = 0x4, scoped, tag = 'scoped memory for tpu_custom_call.1']
    #allocation9 [shape = 'u8[16384]{0}', space=vmem, size = 0x4000, scoped, tag = 'input window, operand 2, single buffered']
    #allocation10 [shape = 'u8[16384]{0}', space=vmem, size = 0x4000, scoped, tag = 'input window, operand 3, single buffered']
    #allocation11 [shape = 's32[1]{0}', space=sflag, size = 0x4, scoped, tag = 'scoped memory for tpu_custom_call.1']
    #allocation12 [shape = 'u8[8192]{0}', space=vmem, size = 0x2000, scoped, tag = 'output window, operand 0']
    %13 = vsyncpa [#allocation5], 0
    %s14 = scalar_lea.sflag [#allocation5], 1
    %15 = vsyncpa %s14, 0
    %16 = vsyncpa [#allocation8], 0
    %17 = vsyncpa [#allocation11], 0
    %18 = vsyncpa [#allocation6], 0
    %s19 = scalar_lea.sflag [#allocation6], 1
    %20 = vsyncpa %s19, 0
    loop: start=0, step=1, limit=4
    $region2: #{tpu_custom_call.1} parent=1 // loop_pre_header
      _
    $region3: #{tpu_custom_call.1} parent=1 // loop_header
      %s22 = sphi 0, %s26
      %p23 = scmp.ge.s32.totalorder %s22, 4
      %s29 = sphi 0, %s41
      %s30 = sphi 0, %s37
      %s31 = sphi 0, %s29
      %s32 = sphi 0, %s30
      %s33 = sphi 0, %s31
      %s34 = sphi 0, %s32
      %s44 = sphi 0, %s46
      %s47 = sphi 0, %s44
      %s48 = sphi 0, %s47
      %s64 = sphi 0, %s48
      %s68 = sphi 0, %s68
      %s70 = sphi 0, %s68
      %s71 = sphi 0, %s70
      %s85 = sphi 0, %s71
      %s89 = sphi 0, %s89
      %s91 = sphi 0, %s89
      %s92 = sphi 0, %s91
      %s106 = sphi 0, %s92
      %s110 = sphi 0, %s110
      %s112 = sphi 0, %s110
      %s113 = sphi 0, %s112
      %s127 = sphi 0, %s113
      %s131 = sphi 0, %s131
      %s133 = sphi 0, %s131
      %s134 = sphi 0, %s133
      %s148 = sphi 0, %s134
      %s152 = sphi 0, %s152
      %s154 = sphi 0, %s152
      %s155 = sphi 0, %s154
      %s169 = sphi 0, %s155
      %s173 = sphi 0, %s173
      %s175 = sphi 0, %s173
      %s176 = sphi 0, %s175
      %s190 = sphi 0, %s176
      %s196 = sphi 0, %s198
      %s199 = sphi 0, %s196
      %s200 = sphi 0, %s199
      %s216 = sphi 0, %s200
      %s224 = sphi 0, %s226
      %s227 = sphi 0, %s224
      %s228 = sphi 0, %s227
      %s244 = sphi 0, %s228
    $region4: #{tpu_custom_call.1} parent=1 // loop_header_branch
      %25 = sbr.rel (%p23) target = $region8
    $region5: #{tpu_custom_call.1} parent=1 // loop_body
      %s27 = ssub.s32 %s22, 1
      %s28 = ssub.s32 %s22, 2
      %s35 = sadd.s32 1, %s30
      %p36 = scmp.ge.s32.totalorder %s35, 1
      %s37 = scalar_select %p36, 0, %s35
      %s38 = sadd.s32 1, %s29
      %s39 = scalar_select %p36, %s38, %s29
      %p40 = scmp.ge.s32.totalorder %s39, 2
      %s41 = scalar_select %p40, 0, %s39
      %s42 = ssub.s32 %s29, %s41
      %p43 = scmp.eq.s32.totalorder %s42, 0
      %s45 = sadd.s32 %s44, 1
      %s46 = scalar_select %p43, %s44, %s45
      %p49 = pneg %p43
      %p50 = scmp.eq.s32.totalorder %s22, 1
      %p51 = por %p49, %p50
      %p52 = scmp.ne.s32.totalorder %s44, %s47
      %p53 = scmp.eq.s32.totalorder %s22, 0
      %p54 = por %p52, %p53
      %p55 = scmp.ne.s32.totalorder %s44, %s47
      %p56 = scmp.eq.s32.totalorder %s27, 1
      %p57 = por %p55, %p56
      %p58 = scmp.ne.s32.totalorder %s47, %s48
      %p59 = scmp.eq.s32.totalorder %s27, 0
      %p60 = por %p58, %p59
      %p61 = scmp.ne.s32.totalorder %s47, %s48
      %p62 = scmp.eq.s32.totalorder %s28, 1
      %p63 = por %p61, %p62
      %p65 = scmp.ne.s32.totalorder %s48, %s64
      %p66 = scmp.eq.s32.totalorder %s28, 0
      %p67 = por %p65, %p66
      %s69 = sadd.s32 %s68, 1
      %p72 = scmp.eq.s32.totalorder %s22, 1
      %p73 = scmp.ne.s32.totalorder %s68, %s70
      %p74 = scmp.eq.s32.totalorder %s22, 0
      %p75 = por %p73, %p74
      %p76 = scmp.ne.s32.totalorder %s68, %s70
      %p77 = scmp.eq.s32.totalorder %s27, 1
      %p78 = por %p76, %p77
      %p79 = scmp.ne.s32.totalorder %s70, %s71
      %p80 = scmp.eq.s32.totalorder %s27, 0
      %p81 = por %p79, %p80
      %p82 = scmp.ne.s32.totalorder %s70, %s71
      %p83 = scmp.eq.s32.totalorder %s28, 1
      %p84 = por %p82, %p83
      %p86 = scmp.ne.s32.totalorder %s71, %s85
      %p87 = scmp.eq.s32.totalorder %s28, 0
      %p88 = por %p86, %p87
      %s90 = sadd.s32 %s89, 1
      %p93 = scmp.eq.s32.totalorder %s22, 1
      %p94 = scmp.ne.s32.totalorder %s89, %s91
      %p95 = scmp.eq.s32.totalorder %s22, 0
      %p96 = por %p94, %p95
      %p97 = scmp.ne.s32.totalorder %s89, %s91
      %p98 = scmp.eq.s32.totalorder %s27, 1
      %p99 = por %p97, %p98
      %p100 = scmp.ne.s32.totalorder %s91, %s92
      %p101 = scmp.eq.s32.totalorder %s27, 0
      %p102 = por %p100, %p101
      %p103 = scmp.ne.s32.totalorder %s91, %s92
      %p104 = scmp.eq.s32.totalorder %s28, 1
      %p105 = por %p103, %p104
      %p107 = scmp.ne.s32.totalorder %s92, %s106
      %p108 = scmp.eq.s32.totalorder %s28, 0
      %p109 = por %p107, %p108
      %s111 = sadd.s32 %s110, 1
      %p114 = scmp.eq.s32.totalorder %s22, 1
      %p115 = scmp.ne.s32.totalorder %s110, %s112
      %p116 = scmp.eq.s32.totalorder %s22, 0
      %p117 = por %p115, %p116
      %p118 = scmp.ne.s32.totalorder %s110, %s112
      %p119 = scmp.eq.s32.totalorder %s27, 1
      %p120 = por %p118, %p119
      %p121 = scmp.ne.s32.totalorder %s112, %s113
      %p122 = scmp.eq.s32.totalorder %s27, 0
      %p123 = por %p121, %p122
      %p124 = scmp.ne.s32.totalorder %s112, %s113
      %p125 = scmp.eq.s32.totalorder %s28, 1
      %p126 = por %p124, %p125
      %p128 = scmp.ne.s32.totalorder %s113, %s127
      %p129 = scmp.eq.s32.totalorder %s28, 0
      %p130 = por %p128, %p129
      %s132 = sadd.s32 %s131, 1
      %p135 = scmp.eq.s32.totalorder %s22, 1
      %p136 = scmp.ne.s32.totalorder %s131, %s133
      %p137 = scmp.eq.s32.totalorder %s22, 0
      %p138 = por %p136, %p137
      %p139 = scmp.ne.s32.totalorder %s131, %s133
      %p140 = scmp.eq.s32.totalorder %s27, 1
      %p141 = por %p139, %p140
      %p142 = scmp.ne.s32.totalorder %s133, %s134
      %p143 = scmp.eq.s32.totalorder %s27, 0
      %p144 = por %p142, %p143
      %p145 = scmp.ne.s32.totalorder %s133, %s134
      %p146 = scmp.eq.s32.totalorder %s28, 1
      %p147 = por %p145, %p146
      %p149 = scmp.ne.s32.totalorder %s134, %s148
      %p150 = scmp.eq.s32.totalorder %s28, 0
      %p151 = por %p149, %p150
      %s153 = sadd.s32 %s152, 1
      %p156 = scmp.eq.s32.totalorder %s22, 1
      %p157 = scmp.ne.s32.totalorder %s152, %s154
      %p158 = scmp.eq.s32.totalorder %s22, 0
      %p159 = por %p157, %p158
      %p160 = scmp.ne.s32.totalorder %s152, %s154
      %p161 = scmp.eq.s32.totalorder %s27, 1
      %p162 = por %p160, %p161
      %p163 = scmp.ne.s32.totalorder %s154, %s155
      %p164 = scmp.eq.s32.totalorder %s27, 0
      %p165 = por %p163, %p164
      %p166 = scmp.ne.s32.totalorder %s154, %s155
      %p167 = scmp.eq.s32.totalorder %s28, 1
      %p168 = por %p166, %p167
      %p170 = scmp.ne.s32.totalorder %s155, %s169
      %p171 = scmp.eq.s32.totalorder %s28, 0
      %p172 = por %p170, %p171
      %s174 = sadd.s32 %s173, 1
      %p177 = scmp.eq.s32.totalorder %s22, 1
      %p178 = scmp.ne.s32.totalorder %s173, %s175
      %p179 = scmp.eq.s32.totalorder %s22, 0
      %p180 = por %p178, %p179
      %p181 = scmp.ne.s32.totalorder %s173, %s175
      %p182 = scmp.eq.s32.totalorder %s27, 1
      %p183 = por %p181, %p182
      %p184 = scmp.ne.s32.totalorder %s175, %s176
      %p185 = scmp.eq.s32.totalorder %s27, 0
      %p186 = por %p184, %p185
      %p187 = scmp.ne.s32.totalorder %s175, %s176
      %p188 = scmp.eq.s32.totalorder %s28, 1
      %p189 = por %p187, %p188
      %p191 = scmp.ne.s32.totalorder %s176, %s190
      %p192 = scmp.eq.s32.totalorder %s28, 0
      %p193 = por %p191, %p192
      %s194 = ssub.s32 %s29, %s41
      %p195 = scmp.eq.s32.totalorder %s194, 0
      %s197 = sadd.s32 %s196, 1
      %s198 = scalar_select %p195, %s196, %s197
      %p201 = pneg %p195
      %p202 = scmp.eq.s32.totalorder %s22, 1
      %p203 = por %p201, %p202
      %p204 = scmp.ne.s32.totalorder %s196, %s199
      %p205 = scmp.eq.s32.totalorder %s22, 0
      %p206 = por %p204, %p205
      %p207 = scmp.ne.s32.totalorder %s196, %s199
      %p208 = scmp.eq.s32.totalorder %s27, 1
      %p209 = por %p207, %p208
      %p210 = scmp.ne.s32.totalorder %s199, %s200
      %p211 = scmp.eq.s32.totalorder %s27, 0
      %p212 = por %p210, %p211
      %p213 = scmp.ne.s32.totalorder %s199, %s200
      %p214 = scmp.eq.s32.totalorder %s28, 1
      %p215 = por %p213, %p214
      %p217 = scmp.ne.s32.totalorder %s200, %s216
      %p218 = scmp.eq.s32.totalorder %s28, 0
      %p219 = por %p217, %p218
      %s220 = ssub.s32 %s29, %s41
      %s221 = ssub.s32 %s30, %s37
      %s222 = sor.u32 %s220, %s221
      %p223 = scmp.eq.s32.totalorder %s222, 0
      %s225 = sadd.s32 %s224, 1
      %s226 = scalar_select %p223, %s224, %s225
      %p229 = pneg %p223
      %p230 = scmp.eq.s32.totalorder %s22, 1
      %p231 = por %p229, %p230
      %p232 = scmp.ne.s32.totalorder %s224, %s227
      %p233 = scmp.eq.s32.totalorder %s22, 0
      %p234 = por %p232, %p233
      %p235 = scmp.ne.s32.totalorder %s224, %s227
      %p236 = scmp.eq.s32.totalorder %s27, 1
      %p237 = por %p235, %p236
      %p238 = scmp.ne.s32.totalorder %s227, %s228
      %p239 = scmp.eq.s32.totalorder %s27, 0
      %p240 = por %p238, %p239
      %p241 = scmp.ne.s32.totalorder %s227, %s228
      %p242 = scmp.eq.s32.totalorder %s28, 1
      %p243 = por %p241, %p242
      %p245 = scmp.ne.s32.totalorder %s228, %s244
      %p246 = scmp.eq.s32.totalorder %s28, 0
      %p247 = por %p245, %p246
      %p248 = scmp.le.s32.totalorder 1, %s22
      %p249 = scmp.lt.s32.totalorder %s22, 3
      %p250 = pnand %p248, %p249
      %p251 = pneg %p250
      // Predicated region
      $region9: #{tpu_custom_call.1} parent=5 // pred_check
        _
      $region10: #{tpu_custom_call.1} parent=5 // pred_check_branch
        %253 = sbr.rel (%p250) target = $region12
      $region11: #{tpu_custom_call.1} parent=5 // pred_region
        %s254 = ssub.s32 %s22, 1
        // Predicated region
        $region13: #{tpu_custom_call.1} parent=11 // pred_check
          %p255 = pneg %p81
        $region14: #{tpu_custom_call.1} parent=11 // pred_check_branch
          %257 = sbr.rel (%p255) target = $region16
        $region15: #{tpu_custom_call.1} parent=11 // pred_region
          %s259 = ssub.s32 512, 512
          %260 = vsyncadd [#allocation8], %s259
          %s261 = sshll.u32 [#allocation7], 4
          %s262 = int_to_ptr.vmem [resolvable:$true] %s261
          %267 = dma.hbm_to_vmem [thread:$0]  %s1, 512, %s262, [#allocation8], 128, 128, 8
        $region16: #{tpu_custom_call.1} parent=11 // pred_fallthru
          _
        // Predicated region
        $region17: #{tpu_custom_call.1} parent=11 // pred_check
          %p268 = pneg %p102
        $region18: #{tpu_custom_call.1} parent=11 // pred_check_branch
          %270 = sbr.rel (%p268) target = $region20
        $region19: #{tpu_custom_call.1} parent=11 // pred_region
          %s272 = ssub.s32 512, 512
          %273 = vsyncadd [#allocation8], %s272
          %s274 = sshll.u32 [#allocation9], 4
          %s275 = int_to_ptr.vmem [resolvable:$true] %s274
          %280 = dma.hbm_to_vmem [thread:$0]  %s2, 512, %s275, [#allocation8], 128, 128, 8
        $region20: #{tpu_custom_call.1} parent=11 // pred_fallthru
          _
        // Predicated region
        $region21: #{tpu_custom_call.1} parent=11 // pred_check
          %p281 = pneg %p123
        $region22: #{tpu_custom_call.1} parent=11 // pred_check_branch
          %283 = sbr.rel (%p281) target = $region24
        $region23: #{tpu_custom_call.1} parent=11 // pred_region
          %s285 = ssub.s32 512, 512
          %286 = vsyncadd [#allocation11], %s285
          %s287 = sshll.u32 [#allocation10], 4
          %s288 = int_to_ptr.vmem [resolvable:$true] %s287
          %293 = dma.hbm_to_vmem [thread:$0]  %s3, 512, %s288, [#allocation11], 128, 128, 8
        $region24: #{tpu_custom_call.1} parent=11 // pred_fallthru
          _
        // Predicated region
        $region25: #{tpu_custom_call.1} parent=11 // pred_check
          %p294 = pneg %p144
        $region26: #{tpu_custom_call.1} parent=11 // pred_check_branch
          %296 = sbr.rel (%p294) target = $region28
        $region27: #{tpu_custom_call.1} parent=11 // pred_region
          _
        $region28: #{tpu_custom_call.1} parent=11 // pred_fallthru
          _
        // Predicated region
        $region29: #{tpu_custom_call.1} parent=11 // pred_check
          %p297 = pneg %p165
        $region30: #{tpu_custom_call.1} parent=11 // pred_check_branch
          %299 = sbr.rel (%p297) target = $region32
        $region31: #{tpu_custom_call.1} parent=11 // pred_region
          _
        $region32: #{tpu_custom_call.1} parent=11 // pred_fallthru
          _
        // Predicated region
        $region33: #{tpu_custom_call.1} parent=11 // pred_check
          %p300 = pneg %p186
        $region34: #{tpu_custom_call.1} parent=11 // pred_check_branch
          %302 = sbr.rel (%p300) target = $region36
        $region35: #{tpu_custom_call.1} parent=11 // pred_region
          _
        $region36: #{tpu_custom_call.1} parent=11 // pred_fallthru
          _
      $region12: #{tpu_custom_call.1} parent=5 // pred_fallthru
        _
      %p303 = scmp.lt.s32.totalorder %s22, 2
      // Predicated region
      $region37: #{tpu_custom_call.1} parent=5 // pred_check
        %p304 = pneg %p303
      $region38: #{tpu_custom_call.1} parent=5 // pred_check_branch
        %306 = sbr.rel (%p304) target = $region40
      $region39: #{tpu_custom_call.1} parent=5 // pred_region
        // Predicated region
        $region41: #{tpu_custom_call.1} parent=39 // pred_check
          %p307 = pneg %p54
        $region42: #{tpu_custom_call.1} parent=39 // pred_check_branch
          %309 = sbr.rel (%p307) target = $region44
        $region43: #{tpu_custom_call.1} parent=39 // pred_region
          %s310 = sand.u32 %s44, 1
          %s311 = scalar_lea.sflag [#allocation5], %s310
          %s312 = sand.u32 %s44, 1
          %s313 = smul.addr %s312, 8
          %s314 = scalar_lea.vmem [#allocation4], %s313
          %s316 = ssub.s32 128, 128
          %317 = vsyncadd %s311, %s316
          %s318 = smul.addr %s29, 128
          %s319 = scalar_lea.hbm %s0, %s318
          %s321 = sshll.u32 %s314, 4
          %s322 = int_to_ptr.vmem [resolvable:$true] %s321
          %324 = dma.hbm_to_vmem [thread:$0]  %s319, 128, %s322, %s311
        $region44: #{tpu_custom_call.1} parent=39 // pred_fallthru
          _
        // Predicated region
        $region45: #{tpu_custom_call.1} parent=39 // pred_check
          %p325 = pneg %p206
        $region46: #{tpu_custom_call.1} parent=39 // pred_check_branch
          %327 = sbr.rel (%p325) target = $region48
        $region47: #{tpu_custom_call.1} parent=39 // pred_region
          %p328 = scmp.lt.s32.totalorder %s29, 1
          %s329 = scalar_select %p328, %s29, 1
          %s330 = scalar_lea.vmem %s7, %s329
        $region48: #{tpu_custom_call.1} parent=39 // pred_fallthru
          _
      $region40: #{tpu_custom_call.1} parent=5 // pred_fallthru
        _
      %p331 = scmp.le.s32.totalorder 1, %s22
      %p332 = scmp.lt.s32.totalorder %s22, 3
      %p333 = pnand %p331, %p332
      %p334 = pneg %p333
      // Predicated region
      $region49: #{tpu_custom_call.1} parent=5 // pred_check
        _
      $region50: #{tpu_custom_call.1} parent=5 // pred_check_branch
        %336 = sbr.rel (%p333) target = $region52
      $region51: #{tpu_custom_call.1} parent=5 // pred_region
        %s337 = ssub.s32 %s22, 1
        %s338 = sand.u32 %s47, 1
        %s339 = scalar_lea.sflag [#allocation5], %s338
        %s340 = sand.u32 %s47, 1
        %s341 = smul.addr %s340, 8
        %s342 = scalar_lea.vmem [#allocation4], %s341
        // Predicated region
        $region53: #{tpu_custom_call.1} parent=51 // pred_check
          %p343 = pneg %p60
        $region54: #{tpu_custom_call.1} parent=51 // pred_check_branch
          %345 = sbr.rel (%p343) target = $region56
        $region55: #{tpu_custom_call.1} parent=51 // pred_region
          %346 = dma.done %s339, 128
        $region56: #{tpu_custom_call.1} parent=51 // pred_fallthru
          _
        // Predicated region
        $region57: #{tpu_custom_call.1} parent=51 // pred_check
          %p347 = pneg %p81
        $region58: #{tpu_custom_call.1} parent=51 // pred_check_branch
          %349 = sbr.rel (%p347) target = $region60
        $region59: #{tpu_custom_call.1} parent=51 // pred_region
          %350 = dma.done [#allocation8], 512
        $region60: #{tpu_custom_call.1} parent=51 // pred_fallthru
          _
        // Predicated region
        $region61: #{tpu_custom_call.1} parent=51 // pred_check
          %p351 = pneg %p102
        $region62: #{tpu_custom_call.1} parent=51 // pred_check_branch
          %353 = sbr.rel (%p351) target = $region64
        $region63: #{tpu_custom_call.1} parent=51 // pred_region
          %354 = dma.done [#allocation8], 512
        $region64: #{tpu_custom_call.1} parent=51 // pred_fallthru
          _
        // Predicated region
        $region65: #{tpu_custom_call.1} parent=51 // pred_check
          %p355 = pneg %p123
        $region66: #{tpu_custom_call.1} parent=51 // pred_check_branch
          %357 = sbr.rel (%p355) target = $region68
        $region67: #{tpu_custom_call.1} parent=51 // pred_region
          %358 = dma.done [#allocation11], 512
        $region68: #{tpu_custom_call.1} parent=51 // pred_fallthru
          _
        %s359 = sand.u32 %s47, 1
        %s360 = scalar_lea.sflag [#allocation5], %s359
        %s361 = sand.u32 %s47, 1
        %s362 = smul.addr %s361, 8
        %s363 = scalar_lea.vmem [#allocation4], %s362
        %p364 = pneg %p60
        %p365 = pneg %p57
        %p366 = pneg %p81
        %p367 = pneg %p78
        %p368 = pneg %p102
        %p369 = pneg %p99
        %p370 = pneg %p123
        %p371 = pneg %p120
        %p372 = pneg %p144
        %p373 = pneg %p141
        %p374 = pneg %p165
        %p375 = pneg %p162
        %p376 = pneg %p186
        %p377 = pneg %p183
        %p378 = scmp.lt.s32.totalorder %s31, 1
        %s379 = scalar_select %p378, %s31, 1
        %s380 = scalar_lea.vmem %s7, %s379
        %p381 = pneg %p212
        %p382 = pneg %p209
        %p383 = pneg %p240
        %p384 = pneg %p237
        %s385 = sand.u32 %s227, 1
        %s386 = scalar_lea.sflag [#allocation6], %s385
        %s387 = sand.u32 %s227, 1
        %s388 = smul.addr %s387, 8
        %s389 = scalar_lea.vmem [#allocation12], %s388
        %p390 = scmp.lt.s32.totalorder %s31, 1
        %s391 = scalar_select %p390, %s31, 1
        %s392 = scalar_lea.vmem %s7, %s391
        %p393 = scmp.eq.s32.totalorder %s32, 0
        // Predicated region
        $region69: #{tpu_custom_call.1} parent=51 // pred_check
          %p394 = pneg %p393
        $region70: #{tpu_custom_call.1} parent=51 // pred_check_branch
          %396 = sbr.rel (%p394) target = $region72
        $region71: #{tpu_custom_call.1} parent=51 // pred_region
          %v397 = vld [vmem:[%s342] sm:$0xff]
          %v398 = vld [vmem:[#allocation9] sm:$0xff]
          %v399 = vld [vmem:[#allocation9 + $0x8] sm:$0xff]
          %v400 = vld [vmem:[#allocation9 + $0x10] sm:$0xff]
          %v401 = vld [vmem:[#allocation9 + $0x18] sm:$0xff]
          %v402 = vld [vmem:[%s5] sm:$0x1]
          %v404 = vlaneseq
          %v405 = vshrl.u32 %v404, 7
          %v406 = vsub.s32 0, %v405
          %v407 = vrot.slane %v402, %v406
          %vm409 = vcmask 261120
          %v411 = vsel %vm409, %v397, 0
          %413 = vmatprep.subr.mxu0 0.0
          %414 = vmatpush1.msra.mxu0 %v398
          %415 = vmatprep.subr.mxu0 0.0
          %416 = vmatpush1.msra.mxu0 %v399
          %417 = vmatprep.subr.mxu0 0.0
          %418 = vmatpush1.msra.mxu0 %v400
          %419 = vmatprep.subr.mxu0 0.0
          %420 = vmatpush1.msra.mxu0 %v401
          %421 = vmatprep.subr.mxu0 0.0
          %422 = vmatpush1.msra.mxu0 0.0
          %423 = vmatprep.subr.mxu0 0.0
          %424 = vmatpush1.msra.mxu0 0.0
          %425 = vmatprep.subr.mxu0 0.0
          %426 = vmatpush1.msra.mxu0 0.0
          %427 = vmatprep.subr.mxu0 0.0
          %428 = vmatpush1.msra.mxu0 0.0
          %429 = vmatprep.subr.mxu0 0.0
          %430 = vmatpush1.msra.mxu0 0.0
          %431 = vmatprep.subr.mxu0 0.0
          %432 = vmatpush1.msra.mxu0 0.0
          %433 = vmatprep.subr.mxu0 0.0
          %434 = vmatpush1.msra.mxu0 0.0
          %435 = vmatprep.subr.mxu0 0.0
          %436 = vmatpush1.msra.mxu0 0.0
          %437 = vmatprep.subr.mxu0 0.0
          %438 = vmatpush1.msra.mxu0 0.0
          %439 = vmatprep.subr.mxu0 0.0
          %440 = vmatpush1.msra.mxu0 0.0
          %441 = vmatprep.subr.mxu0 0.0
          %442 = vmatpush1.msra.mxu0 0.0
          %443 = vmatprep.subr.mxu0 0.0
          %444 = vmatpush1.msra.mxu0 0.0
          %445 = vmatprep.subr.mxu0 0.0
          %446 = vmatpush1.msra.mxu0 0.0
          %447 = vmatprep.subr.mxu0 0.0
          %448 = vmatpush1.msra.mxu0 0.0
          %449 = vmatprep.subr.mxu0 0.0
          %450 = vmatpush1.msra.mxu0 0.0
          %451 = vmatprep.subr.mxu0 0.0
          %452 = vmatpush1.msra.mxu0 0.0
          %453 = vmatprep.subr.mxu0 0.0
          %454 = vmatpush1.msra.mxu0 0.0
          %455 = vmatprep.subr.mxu0 0.0
          %456 = vmatpush1.msra.mxu0 0.0
          %457 = vmatprep.subr.mxu0 0.0
          %458 = vmatpush1.msra.mxu0 0.0
          %459 = vmatprep.subr.mxu0 0.0
          %460 = vmatpush1.msra.mxu0 0.0
          %461 = vmatprep.subr.mxu0 0.0
          %462 = vmatpush1.msra.mxu0 0.0
          %463 = vmatprep.subr.mxu0 0.0
          %464 = vmatpush1.msra.mxu0 0.0
          %465 = vmatprep.subr.mxu0 0.0
          %466 = vmatpush1.msra.mxu0 0.0
          %467 = vmatprep.subr.mxu0 0.0
          %468 = vmatpush1.msra.mxu0 0.0
          %469 = vmatprep.subr.mxu0 0.0
          %470 = vmatpush1.msra.mxu0 0.0
          %471 = vmatprep.subr.mxu0 0.0
          %472 = vmatpush1.msra.mxu0 0.0
          %473 = vmatprep.subr.mxu0 0.0
          %474 = vmatpush1.msra.mxu0 0.0
          %475 = vmatprep.subr.mxu0 0.0
          %476 = vmatpush1.msra.mxu0 0.0
          %477 = vmatprep.mubr.f32.mxu0 0.0
          %478 = vmatmul.mubr.f32.gmra.mrb[0].mxu0 %v411
          %v479 = vpop.f32.mrb[0].mxu0
          %v480 = vadd.f32 %v407, %v479
          %v481 = vpop.f32.mrb[0].mxu0
          %482 = vdwg.mxu0
          %v483 = vld [vmem:[#allocation10] sm:$0xff]
          %v484 = vld [vmem:[#allocation10 + $0x8] sm:$0xff]
          %v485 = vld [vmem:[#allocation10 + $0x10] sm:$0xff]
          %v486 = vld [vmem:[#allocation10 + $0x18] sm:$0xff]
          %v487 = vld [vmem:[%s6] sm:$0x1]
          %v489 = vlaneseq
          %v490 = vshrl.u32 %v489, 7
          %v491 = vsub.s32 0, %v490
          %v492 = vrot.slane %v487, %v491
          %494 = vmatprep.subr.mxu0 0.0
          %495 = vmatpush1.msra.mxu0 %v483
          %496 = vmatprep.subr.mxu0 0.0
          %497 = vmatpush1.msra.mxu0 %v484
          %498 = vmatprep.subr.mxu0 0.0
          %499 = vmatpush1.msra.mxu0 %v485
          %500 = vmatprep.subr.mxu0 0.0
          %501 = vmatpush1.msra.mxu0 %v486
          %502 = vmatprep.subr.mxu0 0.0
          %503 = vmatpush1.msra.mxu0 0.0
          %504 = vmatprep.subr.mxu0 0.0
          %505 = vmatpush1.msra.mxu0 0.0
          %506 = vmatprep.subr.mxu0 0.0
          %507 = vmatpush1.msra.mxu0 0.0
          %508 = vmatprep.subr.mxu0 0.0
          %509 = vmatpush1.msra.mxu0 0.0
          %510 = vmatprep.subr.mxu0 0.0
          %511 = vmatpush1.msra.mxu0 0.0
          %512 = vmatprep.subr.mxu0 0.0
          %513 = vmatpush1.msra.mxu0 0.0
          %514 = vmatprep.subr.mxu0 0.0
          %515 = vmatpush1.msra.mxu0 0.0
          %516 = vmatprep.subr.mxu0 0.0
          %517 = vmatpush1.msra.mxu0 0.0
          %518 = vmatprep.subr.mxu0 0.0
          %519 = vmatpush1.msra.mxu0 0.0
          %520 = vmatprep.subr.mxu0 0.0
          %521 = vmatpush1.msra.mxu0 0.0
          %522 = vmatprep.subr.mxu0 0.0
          %523 = vmatpush1.msra.mxu0 0.0
          %524 = vmatprep.subr.mxu0 0.0
          %525 = vmatpush1.msra.mxu0 0.0
          %526 = vmatprep.subr.mxu0 0.0
          %527 = vmatpush1.msra.mxu0 0.0
          %528 = vmatprep.subr.mxu0 0.0
          %529 = vmatpush1.msra.mxu0 0.0
          %530 = vmatprep.subr.mxu0 0.0
          %531 = vmatpush1.msra.mxu0 0.0
          %532 = vmatprep.subr.mxu0 0.0
          %533 = vmatpush1.msra.mxu0 0.0
          %534 = vmatprep.subr.mxu0 0.0
          %535 = vmatpush1.msra.mxu0 0.0
          %536 = vmatprep.subr.mxu0 0.0
          %537 = vmatpush1.msra.mxu0 0.0
          %538 = vmatprep.subr.mxu0 0.0
          %539 = vmatpush1.msra.mxu0 0.0
          %540 = vmatprep.subr.mxu0 0.0
          %541 = vmatpush1.msra.mxu0 0.0
          %542 = vmatprep.subr.mxu0 0.0
          %543 = vmatpush1.msra.mxu0 0.0
          %544 = vmatprep.subr.mxu0 0.0
          %545 = vmatpush1.msra.mxu0 0.0
          %546 = vmatprep.subr.mxu0 0.0
          %547 = vmatpush1.msra.mxu0 0.0
          %548 = vmatprep.subr.mxu0 0.0
          %549 = vmatpush1.msra.mxu0 0.0
          %550 = vmatprep.subr.mxu0 0.0
          %551 = vmatpush1.msra.mxu0 0.0
          %552 = vmatprep.subr.mxu0 0.0
          %553 = vmatpush1.msra.mxu0 0.0
          %554 = vmatprep.subr.mxu0 0.0
          %555 = vmatpush1.msra.mxu0 0.0
          %556 = vmatprep.subr.mxu0 0.0
          %557 = vmatpush1.msra.mxu0 0.0
          %558 = vmatprep.mubr.f32.mxu0 0.0
          %559 = vmatmul.mubr.f32.gmra.mrb[0].mxu0 %v411
          %v560 = vpop.f32.mrb[0].mxu0
          %v561 = vadd.f32 %v492, %v560
          %v562 = vpop.f32.mrb[0].mxu0
          %563 = vdwg.mxu0
          %564 = vst.msk [vmem:[#allocation2] sm:$0xff] %vm409, %v480
          %565 = vst.msk [vmem:[#allocation3] sm:$0xff] %vm409, %v561
        $region72: #{tpu_custom_call.1} parent=51 // pred_fallthru
          _
        %s566 = smul.u32 %s32, 8
        %s567 = scalar_lea.vmem %s342, %s566 [#allocation4]
        %v568 = vld [vmem:[%s567] sm:$0xff]
        %v569 = vld [vmem:[#allocation7] sm:$0xff]
        %v570 = vld [vmem:[#allocation7 + $0x8] sm:$0xff]
        %v571 = vld [vmem:[#allocation7 + $0x10] sm:$0xff]
        %v572 = vld [vmem:[#allocation7 + $0x18] sm:$0xff]
        %v573 = vld [vmem:[%s4] sm:$0x1]
        %v575 = vlaneseq
        %v576 = vshrl.u32 %v575, 7
        %v577 = vsub.s32 0, %v576
        %v578 = vrot.slane %v573, %v577
        %vm580 = vcmask 261120
        %v582 = vsel %vm580, %v568, 0
        %584 = vmatprep.subr.mxu0 0.0
        %585 = vmatpush1.msra.mxu0 %v569
        %586 = vmatprep.subr.mxu0 0.0
        %587 = vmatpush1.msra.mxu0 %v570
        %588 = vmatprep.subr.mxu0 0.0
        %589 = vmatpush1.msra.mxu0 %v571
        %590 = vmatprep.subr.mxu0 0.0
        %591 = vmatpush1.msra.mxu0 %v572
        %592 = vmatprep.subr.mxu0 0.0
        %593 = vmatpush1.msra.mxu0 0.0
        %594 = vmatprep.subr.mxu0 0.0
        %595 = vmatpush1.msra.mxu0 0.0
        %596 = vmatprep.subr.mxu0 0.0
        %597 = vmatpush1.msra.mxu0 0.0
        %598 = vmatprep.subr.mxu0 0.0
        %599 = vmatpush1.msra.mxu0 0.0
        %600 = vmatprep.subr.mxu0 0.0
        %601 = vmatpush1.msra.mxu0 0.0
        %602 = vmatprep.subr.mxu0 0.0
        %603 = vmatpush1.msra.mxu0 0.0
        %604 = vmatprep.subr.mxu0 0.0
        %605 = vmatpush1.msra.mxu0 0.0
        %606 = vmatprep.subr.mxu0 0.0
        %607 = vmatpush1.msra.mxu0 0.0
        %608 = vmatprep.subr.mxu0 0.0
        %609 = vmatpush1.msra.mxu0 0.0
        %610 = vmatprep.subr.mxu0 0.0
        %611 = vmatpush1.msra.mxu0 0.0
        %612 = vmatprep.subr.mxu0 0.0
        %613 = vmatpush1.msra.mxu0 0.0
        %614 = vmatprep.subr.mxu0 0.0
        %615 = vmatpush1.msra.mxu0 0.0
        %616 = vmatprep.subr.mxu0 0.0
        %617 = vmatpush1.msra.mxu0 0.0
        %618 = vmatprep.subr.mxu0 0.0
        %619 = vmatpush1.msra.mxu0 0.0
        %620 = vmatprep.subr.mxu0 0.0
        %621 = vmatpush1.msra.mxu0 0.0
        %622 = vmatprep.subr.mxu0 0.0
        %623 = vmatpush1.msra.mxu0 0.0
        %624 = vmatprep.subr.mxu0 0.0
        %625 = vmatpush1.msra.mxu0 0.0
        %626 = vmatprep.subr.mxu0 0.0
        %627 = vmatpush1.msra.mxu0 0.0
        %628 = vmatprep.subr.mxu0 0.0
        %629 = vmatpush1.msra.mxu0 0.0
        %630 = vmatprep.subr.mxu0 0.0
        %631 = vmatpush1.msra.mxu0 0.0
        %632 = vmatprep.subr.mxu0 0.0
        %633 = vmatpush1.msra.mxu0 0.0
        %634 = vmatprep.subr.mxu0 0.0
        %635 = vmatpush1.msra.mxu0 0.0
        %636 = vmatprep.subr.mxu0 0.0
        %637 = vmatpush1.msra.mxu0 0.0
        %638 = vmatprep.subr.mxu0 0.0
        %639 = vmatpush1.msra.mxu0 0.0
        %640 = vmatprep.subr.mxu0 0.0
        %641 = vmatpush1.msra.mxu0 0.0
        %642 = vmatprep.subr.mxu0 0.0
        %643 = vmatpush1.msra.mxu0 0.0
        %644 = vmatprep.subr.mxu0 0.0
        %645 = vmatpush1.msra.mxu0 0.0
        %646 = vmatprep.subr.mxu0 0.0
        %647 = vmatpush1.msra.mxu0 0.0
        %648 = vmatprep.mubr.f32.mxu0 0.0
        %649 = vmatmul.mubr.f32.gmra.mrb[0].mxu0 %v582
        %v650 = vpop.f32.mrb[0].mxu0
        %v651 = vadd.f32 %v578, %v650
        %v652 = vpop.f32.mrb[0].mxu0
        %653 = vdwg.mxu0
        %v654 = vmul.f32 %v651, 0.35355338
        %v655 = vld [vmem:[%s392] sm:$0x1]
        %v656 = vmul.f32 %v655, 0.35355338
        %v657 = vld [vmem:[#allocation2] sm:$0xff]
        %v658 = vld [vmem:[#allocation3] sm:$0xff]
        %660 = vrot.lane.b32.xlu0 %v654, 120
        %v661 = vpop.permute.xlu0 %660
        %663 = vrot.lane.b32.xlu0 %v657, 120
        %v664 = vpop.permute.xlu0 %663
        %666 = vrot.lane.b32.xlu0 %v658, 120
        %v667 = vpop.permute.xlu0 %666
        %v670 = vlaneseq
        %v671 = vshrl.u32 %v670, 7
        %v672 = vsub.s32 0, %v671
        %v673 = vrot.slane %v656, %v672
        %vm675 = vcmask 64512
        %v676 = vsel %vm675, %v654, 0
        %v678 = vsel %vm675, %v657, 0
        %680 = vmatprep.subr.mxu0 0.0
        %681 = vmatpush1.xpose.msra.mxu0 %v678
        %682 = vmatprep.subr.mxu0 0.0
        %683 = vmatpush1.xpose.msra.mxu0 0.0
        %684 = vmatprep.subr.mxu0 0.0
        %685 = vmatpush1.xpose.msra.mxu0 0.0
        %686 = vmatprep.subr.mxu0 0.0
        %687 = vmatpush1.xpose.msra.mxu0 0.0
        %688 = vmatprep.subr.mxu0 0.0
        %689 = vmatpush1.xpose.msra.mxu0 0.0
        %690 = vmatprep.subr.mxu0 0.0
        %691 = vmatpush1.xpose.msra.mxu0 0.0
        %692 = vmatprep.subr.mxu0 0.0
        %693 = vmatpush1.xpose.msra.mxu0 0.0
        %694 = vmatprep.subr.mxu0 0.0
        %695 = vmatpush1.xpose.msra.mxu0 0.0
        %696 = vmatprep.subr.mxu0 0.0
        %697 = vmatpush1.xpose.msra.mxu0 0.0
        %698 = vmatprep.subr.mxu0 0.0
        %699 = vmatpush1.xpose.msra.mxu0 0.0
        %700 = vmatprep.subr.mxu0 0.0
        %701 = vmatpush1.xpose.msra.mxu0 0.0
        %702 = vmatprep.subr.mxu0 0.0
        %703 = vmatpush1.xpose.msra.mxu0 0.0
        %704 = vmatprep.subr.mxu0 0.0
        %705 = vmatpush1.xpose.msra.mxu0 0.0
        %706 = vmatprep.subr.mxu0 0.0
        %707 = vmatpush1.xpose.msra.mxu0 0.0
        %708 = vmatprep.subr.mxu0 0.0
        %709 = vmatpush1.xpose.msra.mxu0 0.0
        %710 = vmatprep.subr.mxu0 0.0
        %711 = vmatpush1.xpose.msra.mxu0 0.0
        %712 = vmatprep.subr.mxu0 0.0
        %713 = vmatpush1.xpose.msra.mxu0 0.0
        %714 = vmatprep.subr.mxu0 0.0
        %715 = vmatpush1.xpose.msra.mxu0 0.0
        %716 = vmatprep.subr.mxu0 0.0
        %717 = vmatpush1.xpose.msra.mxu0 0.0
        %718 = vmatprep.subr.mxu0 0.0
        %719 = vmatpush1.xpose.msra.mxu0 0.0
        %720 = vmatprep.subr.mxu0 0.0
        %721 = vmatpush1.xpose.msra.mxu0 0.0
        %722 = vmatprep.subr.mxu0 0.0
        %723 = vmatpush1.xpose.msra.mxu0 0.0
        %724 = vmatprep.subr.mxu0 0.0
        %725 = vmatpush1.xpose.msra.mxu0 0.0
        %726 = vmatprep.subr.mxu0 0.0
        %727 = vmatpush1.xpose.msra.mxu0 0.0
        %728 = vmatprep.subr.mxu0 0.0
        %729 = vmatpush1.xpose.msra.mxu0 0.0
        %730 = vmatprep.subr.mxu0 0.0
        %731 = vmatpush1.xpose.msra.mxu0 0.0
        %732 = vmatprep.subr.mxu0 0.0
        %733 = vmatpush1.xpose.msra.mxu0 0.0
        %734 = vmatprep.subr.mxu0 0.0
        %735 = vmatpush1.xpose.msra.mxu0 0.0
        %736 = vmatprep.subr.mxu0 0.0
        %737 = vmatpush1.xpose.msra.mxu0 0.0
        %738 = vmatprep.subr.mxu0 0.0
        %739 = vmatpush1.xpose.msra.mxu0 0.0
        %740 = vmatprep.subr.mxu0 0.0
        %741 = vmatpush1.xpose.msra.mxu0 0.0
        %742 = vmatprep.subr.mxu0 0.0
        %743 = vmatpush1.xpose.msra.mxu0 0.0
        %744 = vmatprep.mubr.f32.mxu0 0.0
        %745 = vmatmul.mubr.f32.gmra.mrb[0].mxu0 %v676
        %v746 = vpop.f32.mrb[0].mxu0
        %v747 = vadd.f32 %v673, %v746
        %v748 = vpop.f32.mrb[0].mxu0
        %749 = vdwg.mxu0
        %v750 = vsel %vm675, %v661, 0
        %v752 = vsel %vm675, %v664, 0
        %754 = vmatprep.subr.mxu0 0.0
        %755 = vmatpush1.xpose.msra.mxu0 %v752
        %756 = vmatprep.subr.mxu0 0.0
        %757 = vmatpush1.xpose.msra.mxu0 0.0
        %758 = vmatprep.subr.mxu0 0.0
        %759 = vmatpush1.xpose.msra.mxu0 0.0
        %760 = vmatprep.subr.mxu0 0.0
        %761 = vmatpush1.xpose.msra.mxu0 0.0
        %762 = vmatprep.subr.mxu0 0.0
        %763 = vmatpush1.xpose.msra.mxu0 0.0
        %764 = vmatprep.subr.mxu0 0.0
        %765 = vmatpush1.xpose.msra.mxu0 0.0
        %766 = vmatprep.subr.mxu0 0.0
        %767 = vmatpush1.xpose.msra.mxu0 0.0
        %768 = vmatprep.subr.mxu0 0.0
        %769 = vmatpush1.xpose.msra.mxu0 0.0
        %770 = vmatprep.subr.mxu0 0.0
        %771 = vmatpush1.xpose.msra.mxu0 0.0
        %772 = vmatprep.subr.mxu0 0.0
        %773 = vmatpush1.xpose.msra.mxu0 0.0
        %774 = vmatprep.subr.mxu0 0.0
        %775 = vmatpush1.xpose.msra.mxu0 0.0
        %776 = vmatprep.subr.mxu0 0.0
        %777 = vmatpush1.xpose.msra.mxu0 0.0
        %778 = vmatprep.subr.mxu0 0.0
        %779 = vmatpush1.xpose.msra.mxu0 0.0
        %780 = vmatprep.subr.mxu0 0.0
        %781 = vmatpush1.xpose.msra.mxu0 0.0
        %782 = vmatprep.subr.mxu0 0.0
        %783 = vmatpush1.xpose.msra.mxu0 0.0
        %784 = vmatprep.subr.mxu0 0.0
        %785 = vmatpush1.xpose.msra.mxu0 0.0
        %786 = vmatprep.subr.mxu0 0.0
        %787 = vmatpush1.xpose.msra.mxu0 0.0
        %788 = vmatprep.subr.mxu0 0.0
        %789 = vmatpush1.xpose.msra.mxu0 0.0
        %790 = vmatprep.subr.mxu0 0.0
        %791 = vmatpush1.xpose.msra.mxu0 0.0
        %792 = vmatprep.subr.mxu0 0.0
        %793 = vmatpush1.xpose.msra.mxu0 0.0
        %794 = vmatprep.subr.mxu0 0.0
        %795 = vmatpush1.xpose.msra.mxu0 0.0
        %796 = vmatprep.subr.mxu0 0.0
        %797 = vmatpush1.xpose.msra.mxu0 0.0
        %798 = vmatprep.subr.mxu0 0.0
        %799 = vmatpush1.xpose.msra.mxu0 0.0
        %800 = vmatprep.subr.mxu0 0.0
        %801 = vmatpush1.xpose.msra.mxu0 0.0
        %802 = vmatprep.subr.mxu0 0.0
        %803 = vmatpush1.xpose.msra.mxu0 0.0
        %804 = vmatprep.subr.mxu0 0.0
        %805 = vmatpush1.xpose.msra.mxu0 0.0
        %806 = vmatprep.subr.mxu0 0.0
        %807 = vmatpush1.xpose.msra.mxu0 0.0
        %808 = vmatprep.subr.mxu0 0.0
        %809 = vmatpush1.xpose.msra.mxu0 0.0
        %810 = vmatprep.subr.mxu0 0.0
        %811 = vmatpush1.xpose.msra.mxu0 0.0
        %812 = vmatprep.subr.mxu0 0.0
        %813 = vmatpush1.xpose.msra.mxu0 0.0
        %814 = vmatprep.subr.mxu0 0.0
        %815 = vmatpush1.xpose.msra.mxu0 0.0
        %816 = vmatprep.subr.mxu0 0.0
        %817 = vmatpush1.xpose.msra.mxu0 0.0
        %818 = vmatprep.mubr.f32.mxu0 0.0
        %819 = vmatmul.mubr.f32.gmra.mrb[0].mxu0 %v750
        %v820 = vpop.f32.mrb[0].mxu0
        %v821 = vadd.f32 %v673, %v820
        %v822 = vpop.f32.mrb[0].mxu0
        %823 = vdwg.mxu0
        %v824 = vsel %vm675, %v747, -inf
        %825 = vmax.xlane.f32.xlu0 %v824
        %v826 = vpop.xlane.xlu0 %825
        %v827 = vsel %vm675, %v821, -inf
        %828 = vmax.xlane.f32.xlu0 %v827
        %v829 = vpop.xlane.xlu0 %828
        %v830 = vsub.f32 %v747, %v826
        %v831 = vsub.f32 %v821, %v829
        %v832 = vmul.f32 %v830, 1.442695
        %v833 = vpow.pop %v832
        %v834 = vmul.f32 %v831, 1.442695
        %v835 = vpow.pop %v834
        %v836 = vsel %vm675, %v833, 0.0
        %837 = vadd.xlane.f32.xlu0 %v836
        %v838 = vpop.xlane.xlu0 %837
        %v839 = vsel %vm675, %v835, 0.0
        %840 = vadd.xlane.f32.xlu0 %v839
        %v841 = vpop.xlane.xlu0 %840
        %v843 = vsel %vm675, %v833, 0
        %845 = vmatprep.subr.mxu0 0.0
        %846 = vmatpush1.msra.mxu0 %v658
        %847 = vmatprep.subr.mxu0 0.0
        %848 = vmatpush1.msra.mxu0 0.0
        %849 = vmatprep.subr.mxu0 0.0
        %850 = vmatpush1.msra.mxu0 0.0
        %851 = vmatprep.subr.mxu0 0.0
        %852 = vmatpush1.msra.mxu0 0.0
        %853 = vmatprep.subr.mxu0 0.0
        %854 = vmatpush1.msra.mxu0 0.0
        %855 = vmatprep.subr.mxu0 0.0
        %856 = vmatpush1.msra.mxu0 0.0
        %857 = vmatprep.subr.mxu0 0.0
        %858 = vmatpush1.msra.mxu0 0.0
        %859 = vmatprep.subr.mxu0 0.0
        %860 = vmatpush1.msra.mxu0 0.0
        %861 = vmatprep.subr.mxu0 0.0
        %862 = vmatpush1.msra.mxu0 0.0
        %863 = vmatprep.subr.mxu0 0.0
        %864 = vmatpush1.msra.mxu0 0.0
        %865 = vmatprep.subr.mxu0 0.0
        %866 = vmatpush1.msra.mxu0 0.0
        %867 = vmatprep.subr.mxu0 0.0
        %868 = vmatpush1.msra.mxu0 0.0
        %869 = vmatprep.subr.mxu0 0.0
        %870 = vmatpush1.msra.mxu0 0.0
        %871 = vmatprep.subr.mxu0 0.0
        %872 = vmatpush1.msra.mxu0 0.0
        %873 = vmatprep.subr.mxu0 0.0
        %874 = vmatpush1.msra.mxu0 0.0
        %875 = vmatprep.subr.mxu0 0.0
        %876 = vmatpush1.msra.mxu0 0.0
        %877 = vmatprep.subr.mxu0 0.0
        %878 = vmatpush1.msra.mxu0 0.0
        %879 = vmatprep.subr.mxu0 0.0
        %880 = vmatpush1.msra.mxu0 0.0
        %881 = vmatprep.subr.mxu0 0.0
        %882 = vmatpush1.msra.mxu0 0.0
        %883 = vmatprep.subr.mxu0 0.0
        %884 = vmatpush1.msra.mxu0 0.0
        %885 = vmatprep.subr.mxu0 0.0
        %886 = vmatpush1.msra.mxu0 0.0
        %887 = vmatprep.subr.mxu0 0.0
        %888 = vmatpush1.msra.mxu0 0.0
        %889 = vmatprep.subr.mxu0 0.0
        %890 = vmatpush1.msra.mxu0 0.0
        %891 = vmatprep.subr.mxu0 0.0
        %892 = vmatpush1.msra.mxu0 0.0
        %893 = vmatprep.subr.mxu0 0.0
        %894 = vmatpush1.msra.mxu0 0.0
        %895 = vmatprep.subr.mxu0 0.0
        %896 = vmatpush1.msra.mxu0 0.0
        %897 = vmatprep.subr.mxu0 0.0
        %898 = vmatpush1.msra.mxu0 0.0
        %899 = vmatprep.subr.mxu0 0.0
        %900 = vmatpush1.msra.mxu0 0.0
        %901 = vmatprep.subr.mxu0 0.0
        %902 = vmatpush1.msra.mxu0 0.0
        %903 = vmatprep.subr.mxu0 0.0
        %904 = vmatpush1.msra.mxu0 0.0
        %905 = vmatprep.subr.mxu0 0.0
        %906 = vmatpush1.msra.mxu0 0.0
        %907 = vmatprep.subr.mxu0 0.0
        %908 = vmatpush1.msra.mxu0 0.0
        %909 = vmatprep.mubr.f32.mxu0 0.0
        %910 = vmatmul.mubr.f32.gmra.mrb[0].mxu0 %v843
        %v911 = vpop.f32.mrb[0].mxu0
        %v912 = vadd.f32 0.0, %v911
        %v913 = vpop.f32.mrb[0].mxu0
        %914 = vdwg.mxu0
        %v916 = vsel %vm675, %v835, 0
        %918 = vmatprep.subr.mxu0 0.0
        %919 = vmatpush1.msra.mxu0 %v667
        %920 = vmatprep.subr.mxu0 0.0
        %921 = vmatpush1.msra.mxu0 0.0
        %922 = vmatprep.subr.mxu0 0.0
        %923 = vmatpush1.msra.mxu0 0.0
        %924 = vmatprep.subr.mxu0 0.0
        %925 = vmatpush1.msra.mxu0 0.0
        %926 = vmatprep.subr.mxu0 0.0
        %927 = vmatpush1.msra.mxu0 0.0
        %928 = vmatprep.subr.mxu0 0.0
        %929 = vmatpush1.msra.mxu0 0.0
        %930 = vmatprep.subr.mxu0 0.0
        %931 = vmatpush1.msra.mxu0 0.0
        %932 = vmatprep.subr.mxu0 0.0
        %933 = vmatpush1.msra.mxu0 0.0
        %934 = vmatprep.subr.mxu0 0.0
        %935 = vmatpush1.msra.mxu0 0.0
        %936 = vmatprep.subr.mxu0 0.0
        %937 = vmatpush1.msra.mxu0 0.0
        %938 = vmatprep.subr.mxu0 0.0
        %939 = vmatpush1.msra.mxu0 0.0
        %940 = vmatprep.subr.mxu0 0.0
        %941 = vmatpush1.msra.mxu0 0.0
        %942 = vmatprep.subr.mxu0 0.0
        %943 = vmatpush1.msra.mxu0 0.0
        %944 = vmatprep.subr.mxu0 0.0
        %945 = vmatpush1.msra.mxu0 0.0
        %946 = vmatprep.subr.mxu0 0.0
        %947 = vmatpush1.msra.mxu0 0.0
        %948 = vmatprep.subr.mxu0 0.0
        %949 = vmatpush1.msra.mxu0 0.0
        %950 = vmatprep.subr.mxu0 0.0
        %951 = vmatpush1.msra.mxu0 0.0
        %952 = vmatprep.subr.mxu0 0.0
        %953 = vmatpush1.msra.mxu0 0.0
        %954 = vmatprep.subr.mxu0 0.0
        %955 = vmatpush1.msra.mxu0 0.0
        %956 = vmatprep.subr.mxu0 0.0
        %957 = vmatpush1.msra.mxu0 0.0
        %958 = vmatprep.subr.mxu0 0.0
        %959 = vmatpush1.msra.mxu0 0.0
        %960 = vmatprep.subr.mxu0 0.0
        %961 = vmatpush1.msra.mxu0 0.0
        %962 = vmatprep.subr.mxu0 0.0
        %963 = vmatpush1.msra.mxu0 0.0
        %964 = vmatprep.subr.mxu0 0.0
        %965 = vmatpush1.msra.mxu0 0.0
        %966 = vmatprep.subr.mxu0 0.0
        %967 = vmatpush1.msra.mxu0 0.0
        %968 = vmatprep.subr.mxu0 0.0
        %969 = vmatpush1.msra.mxu0 0.0
        %970 = vmatprep.subr.mxu0 0.0
        %971 = vmatpush1.msra.mxu0 0.0
        %972 = vmatprep.subr.mxu0 0.0
        %973 = vmatpush1.msra.mxu0 0.0
        %974 = vmatprep.subr.mxu0 0.0
        %975 = vmatpush1.msra.mxu0 0.0
        %976 = vmatprep.subr.mxu0 0.0
        %977 = vmatpush1.msra.mxu0 0.0
        %978 = vmatprep.subr.mxu0 0.0
        %979 = vmatpush1.msra.mxu0 0.0
        %980 = vmatprep.subr.mxu0 0.0
        %981 = vmatpush1.msra.mxu0 0.0
        %982 = vmatprep.mubr.f32.mxu0 0.0
        %983 = vmatmul.mubr.f32.gmra.mrb[0].mxu0 %v916
        %v984 = vpop.f32.mrb[0].mxu0
        %v985 = vadd.f32 0.0, %v984
        %v986 = vpop.f32.mrb[0].mxu0
        %987 = vdwg.mxu0
        %v988 = vrcp.pop %v838
        %v989 = vrcp.pop %v841
        %v990 = vmul.f32 %v912, %v988
        %v991 = vmul.f32 %v985, %v989
        %993 = vrot.lane.b32.xlu0 %v991, 8
        %v994 = vpop.permute.xlu0 %993
        %v996 = vsel %vm675, %v990, %v994
        %vm997 = vcmask 130048
        %998 = vst.msk [vmem:[%s389] sm:$0xff] %vm997, %v996
        %v999 = vld [vmem:[#allocation2] sm:$0xff]
        %v1000 = vld [vmem:[#allocation3] sm:$0xff]
        %1002 = vrot.lane.b32.xlu0 %v999, 120
        %v1003 = vpop.permute.xlu0 %1002
        %1005 = vrot.lane.b32.xlu0 %v1000, 120
        %v1006 = vpop.permute.xlu0 %1005
        %1007 = vrot.lane.b32.xlu0 %v654, 112
        %v1008 = vpop.permute.xlu0 %1007
        %1009 = vrot.lane.b32.xlu0 %v999, 112
        %v1010 = vpop.permute.xlu0 %1009
        %v1011 = vsel %vm675, %v1008, 0
        %v1013 = vsel %vm675, %v1010, 0
        %1015 = vmatprep.subr.mxu0 0.0
        %1016 = vmatpush1.xpose.msra.mxu0 %v1013
        %1017 = vmatprep.subr.mxu0 0.0
        %1018 = vmatpush1.xpose.msra.mxu0 0.0
        %1019 = vmatprep.subr.mxu0 0.0
        %1020 = vmatpush1.xpose.msra.mxu0 0.0
        %1021 = vmatprep.subr.mxu0 0.0
        %1022 = vmatpush1.xpose.msra.mxu0 0.0
        %1023 = vmatprep.subr.mxu0 0.0
        %1024 = vmatpush1.xpose.msra.mxu0 0.0
        %1025 = vmatprep.subr.mxu0 0.0
        %1026 = vmatpush1.xpose.msra.mxu0 0.0
        %1027 = vmatprep.subr.mxu0 0.0
        %1028 = vmatpush1.xpose.msra.mxu0 0.0
        %1029 = vmatprep.subr.mxu0 0.0
        %1030 = vmatpush1.xpose.msra.mxu0 0.0
        %1031 = vmatprep.subr.mxu0 0.0
        %1032 = vmatpush1.xpose.msra.mxu0 0.0
        %1033 = vmatprep.subr.mxu0 0.0
        %1034 = vmatpush1.xpose.msra.mxu0 0.0
        %1035 = vmatprep.subr.mxu0 0.0
        %1036 = vmatpush1.xpose.msra.mxu0 0.0
        %1037 = vmatprep.subr.mxu0 0.0
        %1038 = vmatpush1.xpose.msra.mxu0 0.0
        %1039 = vmatprep.subr.mxu0 0.0
        %1040 = vmatpush1.xpose.msra.mxu0 0.0
        %1041 = vmatprep.subr.mxu0 0.0
        %1042 = vmatpush1.xpose.msra.mxu0 0.0
        %1043 = vmatprep.subr.mxu0 0.0
        %1044 = vmatpush1.xpose.msra.mxu0 0.0
        %1045 = vmatprep.subr.mxu0 0.0
        %1046 = vmatpush1.xpose.msra.mxu0 0.0
        %1047 = vmatprep.subr.mxu0 0.0
        %1048 = vmatpush1.xpose.msra.mxu0 0.0
        %1049 = vmatprep.subr.mxu0 0.0
        %1050 = vmatpush1.xpose.msra.mxu0 0.0
        %1051 = vmatprep.subr.mxu0 0.0
        %1052 = vmatpush1.xpose.msra.mxu0 0.0
        %1053 = vmatprep.subr.mxu0 0.0
        %1054 = vmatpush1.xpose.msra.mxu0 0.0
        %1055 = vmatprep.subr.mxu0 0.0
        %1056 = vmatpush1.xpose.msra.mxu0 0.0
        %1057 = vmatprep.subr.mxu0 0.0
        %1058 = vmatpush1.xpose.msra.mxu0 0.0
        %1059 = vmatprep.subr.mxu0 0.0
        %1060 = vmatpush1.xpose.msra.mxu0 0.0
        %1061 = vmatprep.subr.mxu0 0.0
        %1062 = vmatpush1.xpose.msra.mxu0 0.0
        %1063 = vmatprep.subr.mxu0 0.0
        %1064 = vmatpush1.xpose.msra.mxu0 0.0
        %1065 = vmatprep.subr.mxu0 0.0
        %1066 = vmatpush1.xpose.msra.mxu0 0.0
        %1067 = vmatprep.subr.mxu0 0.0
        %1068 = vmatpush1.xpose.msra.mxu0 0.0
        %1069 = vmatprep.subr.mxu0 0.0
        %1070 = vmatpush1.xpose.msra.mxu0 0.0
        %1071 = vmatprep.subr.mxu0 0.0
        %1072 = vmatpush1.xpose.msra.mxu0 0.0
        %1073 = vmatprep.subr.mxu0 0.0
        %1074 = vmatpush1.xpose.msra.mxu0 0.0
        %1075 = vmatprep.subr.mxu0 0.0
        %1076 = vmatpush1.xpose.msra.mxu0 0.0
        %1077 = vmatprep.subr.mxu0 0.0
        %1078 = vmatpush1.xpose.msra.mxu0 0.0
        %1079 = vmatprep.mubr.f32.mxu0 0.0
        %1080 = vmatmul.mubr.f32.gmra.mrb[0].mxu0 %v1011
        %v1081 = vpop.f32.mrb[0].mxu0
        %v1082 = vadd.f32 %v673, %v1081
        %v1083 = vpop.f32.mrb[0].mxu0
        %1084 = vdwg.mxu0
        %1085 = vrot.lane.b32.xlu0 %v661, 112
        %v1086 = vpop.permute.xlu0 %1085
        %1087 = vrot.lane.b32.xlu0 %v1003, 112
        %v1088 = vpop.permute.xlu0 %1087
        %v1089 = vsel %vm675, %v1086, 0
        %v1091 = vsel %vm675, %v1088, 0
        %1093 = vmatprep.subr.mxu0 0.0
        %1094 = vmatpush1.xpose.msra.mxu0 %v1091
        %1095 = vmatprep.subr.mxu0 0.0
        %1096 = vmatpush1.xpose.msra.mxu0 0.0
        %1097 = vmatprep.subr.mxu0 0.0
        %1098 = vmatpush1.xpose.msra.mxu0 0.0
        %1099 = vmatprep.subr.mxu0 0.0
        %1100 = vmatpush1.xpose.msra.mxu0 0.0
        %1101 = vmatprep.subr.mxu0 0.0
        %1102 = vmatpush1.xpose.msra.mxu0 0.0
        %1103 = vmatprep.subr.mxu0 0.0
        %1104 = vmatpush1.xpose.msra.mxu0 0.0
        %1105 = vmatprep.subr.mxu0 0.0
        %1106 = vmatpush1.xpose.msra.mxu0 0.0
        %1107 = vmatprep.subr.mxu0 0.0
        %1108 = vmatpush1.xpose.msra.mxu0 0.0
        %1109 = vmatprep.subr.mxu0 0.0
        %1110 = vmatpush1.xpose.msra.mxu0 0.0
        %1111 = vmatprep.subr.mxu0 0.0
        %1112 = vmatpush1.xpose.msra.mxu0 0.0
        %1113 = vmatprep.subr.mxu0 0.0
        %1114 = vmatpush1.xpose.msra.mxu0 0.0
        %1115 = vmatprep.subr.mxu0 0.0
        %1116 = vmatpush1.xpose.msra.mxu0 0.0
        %1117 = vmatprep.subr.mxu0 0.0
        %1118 = vmatpush1.xpose.msra.mxu0 0.0
        %1119 = vmatprep.subr.mxu0 0.0
        %1120 = vmatpush1.xpose.msra.mxu0 0.0
        %1121 = vmatprep.subr.mxu0 0.0
        %1122 = vmatpush1.xpose.msra.mxu0 0.0
        %1123 = vmatprep.subr.mxu0 0.0
        %1124 = vmatpush1.xpose.msra.mxu0 0.0
        %1125 = vmatprep.subr.mxu0 0.0
        %1126 = vmatpush1.xpose.msra.mxu0 0.0
        %1127 = vmatprep.subr.mxu0 0.0
        %1128 = vmatpush1.xpose.msra.mxu0 0.0
        %1129 = vmatprep.subr.mxu0 0.0
        %1130 = vmatpush1.xpose.msra.mxu0 0.0
        %1131 = vmatprep.subr.mxu0 0.0
        %1132 = vmatpush1.xpose.msra.mxu0 0.0
        %1133 = vmatprep.subr.mxu0 0.0
        %1134 = vmatpush1.xpose.msra.mxu0 0.0
        %1135 = vmatprep.subr.mxu0 0.0
        %1136 = vmatpush1.xpose.msra.mxu0 0.0
        %1137 = vmatprep.subr.mxu0 0.0
        %1138 = vmatpush1.xpose.msra.mxu0 0.0
        %1139 = vmatprep.subr.mxu0 0.0
        %1140 = vmatpush1.xpose.msra.mxu0 0.0
        %1141 = vmatprep.subr.mxu0 0.0
        %1142 = vmatpush1.xpose.msra.mxu0 0.0
        %1143 = vmatprep.subr.mxu0 0.0
        %1144 = vmatpush1.xpose.msra.mxu0 0.0
        %1145 = vmatprep.subr.mxu0 0.0
        %1146 = vmatpush1.xpose.msra.mxu0 0.0
        %1147 = vmatprep.subr.mxu0 0.0
        %1148 = vmatpush1.xpose.msra.mxu0 0.0
        %1149 = vmatprep.subr.mxu0 0.0
        %1150 = vmatpush1.xpose.msra.mxu0 0.0
        %1151 = vmatprep.subr.mxu0 0.0
        %1152 = vmatpush1.xpose.msra.mxu0 0.0
        %1153 = vmatprep.subr.mxu0 0.0
        %1154 = vmatpush1.xpose.msra.mxu0 0.0
        %1155 = vmatprep.subr.mxu0 0.0
        %1156 = vmatpush1.xpose.msra.mxu0 0.0
        %1157 = vmatprep.mubr.f32.mxu0 0.0
        %1158 = vmatmul.mubr.f32.gmra.mrb[0].mxu0 %v1089
        %v1159 = vpop.f32.mrb[0].mxu0
        %v1160 = vadd.f32 %v673, %v1159
        %v1161 = vpop.f32.mrb[0].mxu0
        %1162 = vdwg.mxu0
        %v1163 = vsel %vm675, %v1082, -inf
        %1164 = vmax.xlane.f32.xlu0 %v1163
        %v1165 = vpop.xlane.xlu0 %1164
        %v1166 = vsel %vm675, %v1160, -inf
        %1167 = vmax.xlane.f32.xlu0 %v1166
        %v1168 = vpop.xlane.xlu0 %1167
        %v1169 = vsub.f32 %v1082, %v1165
        %v1170 = vsub.f32 %v1160, %v1168
        %v1171 = vmul.f32 %v1169, 1.442695
        %v1172 = vpow.pop %v1171
        %v1173 = vmul.f32 %v1170, 1.442695
        %v1174 = vpow.pop %v1173
        %v1175 = vsel %vm675, %v1172, 0.0
        %1176 = vadd.xlane.f32.xlu0 %v1175
        %v1177 = vpop.xlane.xlu0 %1176
        %v1178 = vsel %vm675, %v1174, 0.0
        %1179 = vadd.xlane.f32.xlu0 %v1178
        %v1180 = vpop.xlane.xlu0 %1179
        %1181 = vrot.lane.b32.xlu0 %v1000, 112
        %v1182 = vpop.permute.xlu0 %1181
        %v1185 = vsel %vm675, %v1172, 0
        %1187 = vmatprep.subr.mxu0 0.0
        %1188 = vmatpush1.msra.mxu0 %v1182
        %1189 = vmatprep.subr.mxu0 0.0
        %1190 = vmatpush1.msra.mxu0 0.0
        %1191 = vmatprep.subr.mxu0 0.0
        %1192 = vmatpush1.msra.mxu0 0.0
        %1193 = vmatprep.subr.mxu0 0.0
        %1194 = vmatpush1.msra.mxu0 0.0
        %1195 = vmatprep.subr.mxu0 0.0
        %1196 = vmatpush1.msra.mxu0 0.0
        %1197 = vmatprep.subr.mxu0 0.0
        %1198 = vmatpush1.msra.mxu0 0.0
        %1199 = vmatprep.subr.mxu0 0.0
        %1200 = vmatpush1.msra.mxu0 0.0
        %1201 = vmatprep.subr.mxu0 0.0
        %1202 = vmatpush1.msra.mxu0 0.0
        %1203 = vmatprep.subr.mxu0 0.0
        %1204 = vmatpush1.msra.mxu0 0.0
        %1205 = vmatprep.subr.mxu0 0.0
        %1206 = vmatpush1.msra.mxu0 0.0
        %1207 = vmatprep.subr.mxu0 0.0
        %1208 = vmatpush1.msra.mxu0 0.0
        %1209 = vmatprep.subr.mxu0 0.0
        %1210 = vmatpush1.msra.mxu0 0.0
        %1211 = vmatprep.subr.mxu0 0.0
        %1212 = vmatpush1.msra.mxu0 0.0
        %1213 = vmatprep.subr.mxu0 0.0
        %1214 = vmatpush1.msra.mxu0 0.0
        %1215 = vmatprep.subr.mxu0 0.0
        %1216 = vmatpush1.msra.mxu0 0.0
        %1217 = vmatprep.subr.mxu0 0.0
        %1218 = vmatpush1.msra.mxu0 0.0
        %1219 = vmatprep.subr.mxu0 0.0
        %1220 = vmatpush1.msra.mxu0 0.0
        %1221 = vmatprep.subr.mxu0 0.0
        %1222 = vmatpush1.msra.mxu0 0.0
        %1223 = vmatprep.subr.mxu0 0.0
        %1224 = vmatpush1.msra.mxu0 0.0
        %1225 = vmatprep.subr.mxu0 0.0
        %1226 = vmatpush1.msra.mxu0 0.0
        %1227 = vmatprep.subr.mxu0 0.0
        %1228 = vmatpush1.msra.mxu0 0.0
        %1229 = vmatprep.subr.mxu0 0.0
        %1230 = vmatpush1.msra.mxu0 0.0
        %1231 = vmatprep.subr.mxu0 0.0
        %1232 = vmatpush1.msra.mxu0 0.0
        %1233 = vmatprep.subr.mxu0 0.0
        %1234 = vmatpush1.msra.mxu0 0.0
        %1235 = vmatprep.subr.mxu0 0.0
        %1236 = vmatpush1.msra.mxu0 0.0
        %1237 = vmatprep.subr.mxu0 0.0
        %1238 = vmatpush1.msra.mxu0 0.0
        %1239 = vmatprep.subr.mxu0 0.0
        %1240 = vmatpush1.msra.mxu0 0.0
        %1241 = vmatprep.subr.mxu0 0.0
        %1242 = vmatpush1.msra.mxu0 0.0
        %1243 = vmatprep.subr.mxu0 0.0
        %1244 = vmatpush1.msra.mxu0 0.0
        %1245 = vmatprep.subr.mxu0 0.0
        %1246 = vmatpush1.msra.mxu0 0.0
        %1247 = vmatprep.subr.mxu0 0.0
        %1248 = vmatpush1.msra.mxu0 0.0
        %1249 = vmatprep.subr.mxu0 0.0
        %1250 = vmatpush1.msra.mxu0 0.0
        %1251 = vmatprep.mubr.f32.mxu0 0.0
        %1252 = vmatmul.mubr.f32.gmra.mrb[0].mxu0 %v1185
        %v1253 = vpop.f32.mrb[0].mxu0
        %v1254 = vadd.f32 0.0, %v1253
        %v1255 = vpop.f32.mrb[0].mxu0
        %1256 = vdwg.mxu0
        %1257 = vrot.lane.b32.xlu0 %v1006, 112
        %v1258 = vpop.permute.xlu0 %1257
        %v1261 = vsel %vm675, %v1174, 0
        %1263 = vmatprep.subr.mxu0 0.0
        %1264 = vmatpush1.msra.mxu0 %v1258
        %1265 = vmatprep.subr.mxu0 0.0
        %1266 = vmatpush1.msra.mxu0 0.0
        %1267 = vmatprep.subr.mxu0 0.0
        %1268 = vmatpush1.msra.mxu0 0.0
        %1269 = vmatprep.subr.mxu0 0.0
        %1270 = vmatpush1.msra.mxu0 0.0
        %1271 = vmatprep.subr.mxu0 0.0
        %1272 = vmatpush1.msra.mxu0 0.0
        %1273 = vmatprep.subr.mxu0 0.0
        %1274 = vmatpush1.msra.mxu0 0.0
        %1275 = vmatprep.subr.mxu0 0.0
        %1276 = vmatpush1.msra.mxu0 0.0
        %1277 = vmatprep.subr.mxu0 0.0
        %1278 = vmatpush1.msra.mxu0 0.0
        %1279 = vmatprep.subr.mxu0 0.0
        %1280 = vmatpush1.msra.mxu0 0.0
        %1281 = vmatprep.subr.mxu0 0.0
        %1282 = vmatpush1.msra.mxu0 0.0
        %1283 = vmatprep.subr.mxu0 0.0
        %1284 = vmatpush1.msra.mxu0 0.0
        %1285 = vmatprep.subr.mxu0 0.0
        %1286 = vmatpush1.msra.mxu0 0.0
        %1287 = vmatprep.subr.mxu0 0.0
        %1288 = vmatpush1.msra.mxu0 0.0
        %1289 = vmatprep.subr.mxu0 0.0
        %1290 = vmatpush1.msra.mxu0 0.0
        %1291 = vmatprep.subr.mxu0 0.0
        %1292 = vmatpush1.msra.mxu0 0.0
        %1293 = vmatprep.subr.mxu0 0.0
        %1294 = vmatpush1.msra.mxu0 0.0
        %1295 = vmatprep.subr.mxu0 0.0
        %1296 = vmatpush1.msra.mxu0 0.0
        %1297 = vmatprep.subr.mxu0 0.0
        %1298 = vmatpush1.msra.mxu0 0.0
        %1299 = vmatprep.subr.mxu0 0.0
        %1300 = vmatpush1.msra.mxu0 0.0
        %1301 = vmatprep.subr.mxu0 0.0
        %1302 = vmatpush1.msra.mxu0 0.0
        %1303 = vmatprep.subr.mxu0 0.0
        %1304 = vmatpush1.msra.mxu0 0.0
        %1305 = vmatprep.subr.mxu0 0.0
        %1306 = vmatpush1.msra.mxu0 0.0
        %1307 = vmatprep.subr.mxu0 0.0
        %1308 = vmatpush1.msra.mxu0 0.0
        %1309 = vmatprep.subr.mxu0 0.0
        %1310 = vmatpush1.msra.mxu0 0.0
        %1311 = vmatprep.subr.mxu0 0.0
        %1312 = vmatpush1.msra.mxu0 0.0
        %1313 = vmatprep.subr.mxu0 0.0
        %1314 = vmatpush1.msra.mxu0 0.0
        %1315 = vmatprep.subr.mxu0 0.0
        %1316 = vmatpush1.msra.mxu0 0.0
        %1317 = vmatprep.subr.mxu0 0.0
        %1318 = vmatpush1.msra.mxu0 0.0
        %1319 = vmatprep.subr.mxu0 0.0
        %1320 = vmatpush1.msra.mxu0 0.0
        %1321 = vmatprep.subr.mxu0 0.0
        %1322 = vmatpush1.msra.mxu0 0.0
        %1323 = vmatprep.subr.mxu0 0.0
        %1324 = vmatpush1.msra.mxu0 0.0
        %1325 = vmatprep.subr.mxu0 0.0
        %1326 = vmatpush1.msra.mxu0 0.0
        %1327 = vmatprep.mubr.f32.mxu0 0.0
        %1328 = vmatmul.mubr.f32.gmra.mrb[0].mxu0 %v1261
        %v1329 = vpop.f32.mrb[0].mxu0
        %v1330 = vadd.f32 0.0, %v1329
        %v1331 = vpop.f32.mrb[0].mxu0
        %1332 = vdwg.mxu0
        %v1333 = vrcp.pop %v1177
        %v1334 = vrcp.pop %v1180
        %v1335 = vmul.f32 %v1254, %v1333
        %v1336 = vmul.f32 %v1330, %v1334
        %1338 = vrot.lane.b32.xlu0 %v1336, 8
        %v1339 = vpop.permute.xlu0 %1338
        %v1341 = vsel %vm675, %v1335, %v1339
        %1343 = vrot.lane.b32.xlu0 %v1341, 16
        %v1344 = vpop.permute.xlu0 %1343
        %vm1346 = vcmask 261248
        %1347 = vst.msk [vmem:[%s389] sm:$0xff] %vm1346, %v1344
        %s1348 = sand.u32 %s227, 1
        %s1349 = scalar_lea.sflag [#allocation6], %s1348
        %s1350 = sand.u32 %s227, 1
        %s1351 = smul.addr %s1350, 8
        %s1352 = scalar_lea.vmem [#allocation12], %s1351
        // Predicated region
        $region73: #{tpu_custom_call.1} parent=51 // pred_check
          %p1353 = pneg %p237
        $region74: #{tpu_custom_call.1} parent=51 // pred_check_branch
          %1355 = sbr.rel (%p1353) target = $region76
        $region75: #{tpu_custom_call.1} parent=51 // pred_region
          %s1357 = ssub.s32 128, 128
          %1358 = vsyncadd %s1349, %s1357
          %s1359 = sadd.s32 %s32, %s31
          %s1360 = smul.addr %s1359, 128
          %s1361 = scalar_lea.hbm %s8, %s1360
          %s1363 = sshll.u32 %s1352, 4
          %s1364 = int_to_ptr.vmem [resolvable:$true] %s1363
          %1366 = dma.vmem_to_hbm [thread:$0]  %s1364, 128, %s1361, %s1349
        $region76: #{tpu_custom_call.1} parent=51 // pred_fallthru
          _
      $region52: #{tpu_custom_call.1} parent=5 // pred_fallthru
        _
      %p1367 = scmp.le.s32.totalorder 2, %s22
      // Predicated region
      $region77: #{tpu_custom_call.1} parent=5 // pred_check
        %p1368 = pneg %p1367
      $region78: #{tpu_custom_call.1} parent=5 // pred_check_branch
        %1370 = sbr.rel (%p1368) target = $region80
      $region79: #{tpu_custom_call.1} parent=5 // pred_region
        %s1371 = ssub.s32 %s22, 2
        // Predicated region
        $region81: #{tpu_custom_call.1} parent=79 // pred_check
          %p1372 = pneg %p243
        $region82: #{tpu_custom_call.1} parent=79 // pred_check_branch
          %1374 = sbr.rel (%p1372) target = $region84
        $region83: #{tpu_custom_call.1} parent=79 // pred_region
          %s1375 = sand.u32 %s228, 1
          %s1376 = scalar_lea.sflag [#allocation6], %s1375
          %s1377 = sand.u32 %s228, 1
          %s1378 = smul.addr %s1377, 8
          %s1379 = scalar_lea.vmem [#allocation12], %s1378
          %1380 = dma.done %s1376, 128
        $region84: #{tpu_custom_call.1} parent=79 // pred_fallthru
          _
      $region80: #{tpu_custom_call.1} parent=5 // pred_fallthru
        _
    $region6: #{tpu_custom_call.1} parent=1 // loop_footer
      %s26 = sadd.s32 1, %s22
    $region7: #{tpu_custom_call.1} parent=1 // loop_footer_branch
      %21 = sbr.rel target = $region3
    $region8: #{tpu_custom_call.1} parent=1 // loop_exit
      _
    %1381 = vsyncpa [#allocation5], 1
    %s1382 = scalar_lea.sflag [#allocation5], 1
    %1383 = vsyncpa %s1382, 1
    %1384 = vsyncpa [#allocation8], 1
    %1385 = vsyncpa [#allocation11], 1
    %1386 = vsyncpa [#allocation6], 1
    %s1387 = scalar_lea.sflag [#allocation6], 1
    %1388 = vsyncpa %s1387, 1

</llo_original>
